<compile_context>
chip_gen: v5e
topology: v5e:2x2
jax: 0.10.0
libtpu: 0.0.40
codegen_flags: <defaults>
</compile_context>

<pallas_src>
import functools

import jax
import jax.numpy as jnp
from jax.experimental import pallas as pl
from jax.experimental.pallas import tpu as pltpu


def _sigmoid(x):
    # Single EUP transcendental per call (vs exp + divide); exact same function.
    return 0.5 * jnp.tanh(0.5 * x) + 0.5


# ----------------------------- fused LSTM kernel ------------------------------
def _lstm_fused_kernel(x_ref, w_ih_ref, w_hh_ref, b_ref, h_out_ref,
                       h_scr, c_scr, *, chunk, hidden):
    """One grid step == `chunk` LSTM timesteps; h/c carried in VMEM scratch.

    x_ref:    (B, chunk, D) f32   current time-chunk of the input
    w_ih_ref: (D, 4H)       bf16  resident (single-buffered)
    w_hh_ref: (H, 4H)       bf16  resident (single-buffered)
    b_ref:    (1, 4H)       f32   fused bias b_ih + b_hh
    h_out_ref:(B, H)        f32   written on the final grid step only
    """
    t = pl.program_id(0)

    @pl.when(t == 0)
    def _():
        h_scr[...] = jnp.zeros_like(h_scr)
        c_scr[...] = jnp.zeros_like(c_scr)

    H = hidden
    w_ih = w_ih_ref[...]                                   # (D, 4H) bf16
    w_hh = w_hh_ref[...]                                   # (H, 4H) bf16
    b = b_ref[...]                                         # (1, 4H) f32

    # ---- x-projection for the whole chunk: no h dependence, so it is hoisted
    # ---- off the serial critical path (straight-line code; the scheduler can
    # ---- overlap these MXU ops with the recurrence below).
    gx = []
    for s in range(chunk):
        x_s = x_ref[:, s, :].astype(jnp.bfloat16)          # (B, D)
        gx.append(jnp.dot(x_s, w_ih, preferred_element_type=jnp.float32) + b)

    # ---- serial recurrence over the chunk (fully unrolled). ----
    h = h_scr[...]                                         # (B, H) f32
    c = c_scr[...]                                         # (B, H) f32
    for s in range(chunk):
        gates = gx[s] + jnp.dot(h.astype(jnp.bfloat16), w_hh,
                                preferred_element_type=jnp.float32)  # (B, 4H)
        # Gate order matches PyTorch: i, f, g, o.
        # NOTE: with H a multiple of 128 these are whole-vreg views; for the
        # demo H=32 they cost a few lane shifts per step (pad H for production).
        i_g = _sigmoid(gates[:, 0 * H:1 * H])
        f_g = _sigmoid(gates[:, 1 * H:2 * H])
        g_g = jnp.tanh(gates[:, 2 * H:3 * H])
        o_g = _sigmoid(gates[:, 3 * H:4 * H])
        c = f_g * c + i_g * g_g
        h = o_g * jnp.tanh(c)

    h_scr[...] = h
    c_scr[...] = c

    @pl.when(t == pl.num_programs(0) - 1)
    def _():
        h_out_ref[...] = h                                  # lane-dense (B, H)


# --------------------------------- helpers -------------------------------------
def _pick_chunk(T, B, D, budget_bytes=4 << 20):
    """Prefer chunk == T (single grid step). Only chunk when the double-buffered
    x chunk would not fit the VMEM budget; a chunk < T must be a multiple of 8
    (sublane rule on the (B, chunk, D) block)."""
    def x_chunk_bytes(c):
        return 2 * B * c * D * 4            # x chunk, f32, double-buffered
    if x_chunk_bytes(T) <= budget_bytes:
        return T
    for c in range(T - (T % 8), 7, -8):
        if c > 0 and T % c == 0 and x_chunk_bytes(c) <= budget_bytes:
            return c
    return T  # TODO(synk): ragged-T tail handling for awkward factorizations.


def _build_lstm_call(B, T, D, H, chunk, *, single_buffer_weights, vmem_limit):
    G = 4 * H

    def const_spec(shape):
        # Constant index_map -> default double-buffering only doubles resident
        # weight VMEM; single-buffer it when supported.
        if single_buffer_weights:
            return pl.BlockSpec(shape, lambda t: (0, 0),
                                pipeline_mode=pl.Buffered(buffer_count=1))
        return pl.BlockSpec(shape, lambda t: (0, 0))

    kernel = functools.partial(_lstm_fused_kernel, chunk=chunk, hidden=H)
    return pl.pallas_call(
        kernel,
        out_shape=jax.ShapeDtypeStruct((B, H), jnp.float32),
        grid_spec=pltpu.PrefetchScalarGridSpec(
            num_scalar_prefetch=0,
            grid=(T // chunk,),
            in_specs=[
                # Time-chunk of x read straight from the (B, T, D) layout; the
                # layout change is pure DMA plumbing (no XLA transpose pass).
                pl.BlockSpec((B, chunk, D), lambda t: (0, t, 0)),
                const_spec((D, G)),                          # W_ih^T (resident)
                const_spec((H, G)),                          # W_hh^T (resident)
                const_spec((1, G)),                          # fused bias
            ],
            out_specs=pl.BlockSpec((B, H), lambda t: (0, 0)),  # h_T, lane-dense
            scratch_shapes=[
                pltpu.VMEM((B, H), jnp.float32),             # h state
                pltpu.VMEM((B, H), jnp.float32),             # c state
            ],
        ),
        compiler_params=pltpu.CompilerParams(
            # Recurrence carried in scratch -> the time axis must stay sequential.
            dimension_semantics=("arbitrary",),
            vmem_limit_bytes=vmem_limit),
    )


# --------------------------------- wrapper --------------------------------------
def custom_lstm_forward(x, params, *, chunk=None):
    """x: (B, T, D) float32 (batch_first, like PyTorch).  Returns (B, O) float32."""
    B, T, D = x.shape
    H = params["w_hh"].shape[1]
    G = 4 * H

    # One-off parameter prep (off the serial critical path).  Matmul operands in
    # bf16; biases / state / elementwise math stay f32.
    w_ih_t = params["w_ih"].T.astype(jnp.bfloat16)                      # (D, 4H)
    w_hh_t = params["w_hh"].T.astype(jnp.bfloat16)                      # (H, 4H)
    b = (params["b_ih"] + params["b_hh"]).astype(jnp.float32)[None, :]  # (1, 4H)

    if chunk is None:
        chunk = _pick_chunk(T, B, D)
    assert T % chunk == 0, (T, chunk)
    assert chunk % 8 == 0 or chunk == T, (T, chunk)

    # Explicit VMEM budget (v7x: 64 MiB physical / 32 MiB scoped default).
    vmem_bytes = (2 * B * chunk * D * 4        # x chunk, double-buffered, f32
                  + (D * G + H * G) * 2        # weights, bf16, single-buffered
                  + G * 4                      # fused bias
                  + 3 * B * H * 4)             # h/c scratch + resident output
    vmem_limit = int(min(2 * vmem_bytes + (8 << 20), 64 << 20))

    try:
        call = _build_lstm_call(B, T, D, H, chunk,
                                single_buffer_weights=True,
                                vmem_limit=vmem_limit)
        h_last = call(x, w_ih_t, w_hh_t, b)
    except Exception:
        # Fallback for jax versions without pl.Buffered(1) single-buffering;
        # only costs extra resident weight VMEM, semantics unchanged.
        call = _build_lstm_call(B, T, D, H, chunk,
                                single_buffer_weights=False,
                                vmem_limit=vmem_limit)
        h_last = call(x, w_ih_t, w_hh_t, b)

    # FC head (H -> O=1) outside the kernel: an N=1 MXU matmul + masked 1-lane
    # store in-kernel would waste the array; the tiny head is negligible in XLA.
    out = h_last @ params["w_fc"].T.astype(jnp.float32) + params["b_fc"]
    return out


# ----------------------------- pure-JAX reference -------------------------------
def custom_lstm_reference(x, params, *, matmul_dtype=jnp.float32):
    """Reference LSTM; matmul_dtype=bf16 mirrors the kernel's precision choices."""
    H = params["w_hh"].shape[1]
    w_ih_t = params["w_ih"].T.astype(matmul_dtype)
    w_hh_t = params["w_hh"].T.astype(matmul_dtype)
    b = (params["b_ih"] + params["b_hh"]).astype(jnp.float32)
    B = x.shape[0]

    def step(carry, x_t):
        h, c = carry
        gates = (jnp.dot(x_t.astype(matmul_dtype), w_ih_t,
                         preferred_element_type=jnp.float32)
                 + jnp.dot(h.astype(matmul_dtype), w_hh_t,
                           preferred_element_type=jnp.float32)
                 + b)
        i_g = jax.nn.sigmoid(gates[:, 0 * H:1 * H])
        f_g = jax.nn.sigmoid(gates[:, 1 * H:2 * H])
        g_g = jnp.tanh(gates[:, 2 * H:3 * H])
        o_g = jax.nn.sigmoid(gates[:, 3 * H:4 * H])
        c = f_g * c + i_g * g_g
        h = o_g * jnp.tanh(c)
        return (h, c), None

    h0 = jnp.zeros((B, H), jnp.float32)
    c0 = jnp.zeros((B, H), jnp.float32)
    (h_last, _), _ = jax.lax.scan(step, (h0, c0), jnp.transpose(x, (1, 0, 2)))
    return h_last @ params["w_fc"].T + params["b_fc"]


# ----------------------------------- main ---------------------------------------
if __name__ == "__main__":
    # Small shapes consistent with the module: batch=2, seq=8, input=16, hidden=32, out=1.
    B, T, D, H, O = 2, 8, 16, 32, 1

    key = jax.random.PRNGKey(0)
    ks = jax.random.split(key, 8)
    scale = 1.0 / jnp.sqrt(H)
    params = {
        "w_ih": jax.random.uniform(ks[0], (4 * H, D), jnp.float32, -scale, scale),
        "w_hh": jax.random.uniform(ks[1], (4 * H, H), jnp.float32, -scale, scale),
        "b_ih": jax.random.uniform(ks[2], (4 * H,), jnp.float32, -scale, scale),
        "b_hh": jax.random.uniform(ks[3], (4 * H,), jnp.float32, -scale, scale),
        "w_fc": jax.random.uniform(ks[4], (O, H), jnp.float32, -scale, scale),
        "b_fc": jax.random.uniform(ks[5], (O,), jnp.float32, -scale, scale),
    }
    x = jax.random.normal(ks[6], (B, T, D), jnp.float32)

    # Default path: chunk == T -> single grid step (the review's main win at
    # these shapes).
    out = jax.block_until_ready(custom_lstm_forward(x, params))
    ref_bf16 = jax.block_until_ready(
        custom_lstm_reference(x, params, matmul_dtype=jnp.bfloat16))
    ref_f32 = jax.block_until_ready(
        custom_lstm_reference(x, params, matmul_dtype=jnp.float32))

    assert out.shape == (B, O), out.shape
    # Tight check vs. a reference using the same bf16-matmul / f32-accumulate path.
    assert jnp.allclose(out, ref_bf16, atol=1e-3, rtol=1e-3), (out, ref_bf16)
    # Loose check vs. full-f32 PyTorch-equivalent math (bf16 operand rounding).
    assert jnp.allclose(out, ref_f32, atol=5e-2, rtol=0.0), (out, ref_f32)

    # Second config: T=16 with chunk=8 -> grid=(2,), exercising the cross-chunk
    # h/c carry in VMEM scratch on hardware.
    x2 = jax.random.normal(ks[7], (B, 16, D), jnp.float32)
    out2 = jax.block_until_ready(custom_lstm_forward(x2, params, chunk=8))
    ref2 = jax.block_until_ready(
        custom_lstm_reference(x2, params, matmul_dtype=jnp.bfloat16))
    assert out2.shape == (B, O), out2.shape
    assert jnp.allclose(out2, ref2, atol=1e-3, rtol=1e-3), (out2, ref2)

    print("KERNEL_OK")
</pallas_src>

<mosaic_0001>
module attributes {stable_mosaic.version = 11 : i64} {
  func.func @_lstm_fused_kernel(%arg0: i32, %arg1: memref<2x8x16xf32, #tpu.memory_space<vmem>>, %arg2: memref<16x128xbf16, #tpu.memory_space<vmem>>, %arg3: memref<32x128xbf16, #tpu.memory_space<vmem>>, %arg4: memref<1x128xf32, #tpu.memory_space<vmem>>, %arg5: memref<2x32xf32, #tpu.memory_space<vmem>>, %arg6: memref<2x32xf32, #tpu.memory_space<vmem>>, %arg7: memref<2x32xf32, #tpu.memory_space<vmem>>) attributes {dimension_semantics = [#tpu.dimension_semantics<arbitrary>], iteration_bounds = array<i64: 1>, scalar_prefetch = 0 : i64, scratch_operands = 2 : i64, tpu.core_type = #tpu.core_type<tc>, window_params = [{transform_indices = @transform_0, window_bounds = array<i64: 2, 8, 16>}, {pipeline_mode = #tpu.pipeline_mode<synchronous>, transform_indices = @transform_1, window_bounds = array<i64: 16, 128>}, {pipeline_mode = #tpu.pipeline_mode<synchronous>, transform_indices = @transform_2, window_bounds = array<i64: 32, 128>}, {pipeline_mode = #tpu.pipeline_mode<synchronous>, transform_indices = @transform_3, window_bounds = array<i64: 1, 128>}, {pipeline_mode = #tpu.pipeline_mode<synchronous>, transform_indices = @transform_4, window_bounds = array<i64: 2, 32>}]} {
    %c0_i32 = arith.constant 0 : i32
    %0 = arith.cmpi eq, %arg0, %c0_i32 : i32
    %1 = arith.extui %0 : i1 to i32
    %c0_i32_0 = arith.constant 0 : i32
    %2 = arith.cmpi ne, %1, %c0_i32_0 : i32
    scf.if %2 {
      %cst_120 = arith.constant 0.000000e+00 : f32
      %333 = vector.broadcast %cst_120 : f32 to vector<2x32xf32>
      %c0_121 = arith.constant 0 : index
      %c0_122 = arith.constant 0 : index
      %334 = vector.load %arg6[%c0_121, %c0_122] : memref<2x32xf32, #tpu.memory_space<vmem>>, vector<2x32xf32>
      tpu.vector_store %arg6[%c0_121, %c0_122], %333 {strides = array<i32>} : memref<2x32xf32, #tpu.memory_space<vmem>>, vector<2x32xf32>,
      %cst_123 = arith.constant 0.000000e+00 : f32
      %335 = vector.broadcast %cst_123 : f32 to vector<2x32xf32>
      %c0_124 = arith.constant 0 : index
      %c0_125 = arith.constant 0 : index
      %336 = vector.load %arg7[%c0_124, %c0_125] : memref<2x32xf32, #tpu.memory_space<vmem>>, vector<2x32xf32>
      tpu.vector_store %arg7[%c0_124, %c0_125], %335 {strides = array<i32>} : memref<2x32xf32, #tpu.memory_space<vmem>>, vector<2x32xf32>,
    } else {
    }
    %c0 = arith.constant 0 : index
    %c0_1 = arith.constant 0 : index
    %3 = vector.load %arg2[%c0, %c0_1] : memref<16x128xbf16, #tpu.memory_space<vmem>>, vector<16x128xbf16>
    %c0_2 = arith.constant 0 : index
    %c0_3 = arith.constant 0 : index
    %4 = vector.load %arg3[%c0_2, %c0_3] : memref<32x128xbf16, #tpu.memory_space<vmem>>, vector<32x128xbf16>
    %c0_4 = arith.constant 0 : index
    %c0_5 = arith.constant 0 : index
    %5 = vector.load %arg4[%c0_4, %c0_5] : memref<1x128xf32, #tpu.memory_space<vmem>>, vector<1x128xf32>
    %c0_6 = arith.constant 0 : index
    %c0_7 = arith.constant 0 : index
    %c0_8 = arith.constant 0 : index
    %6 = vector.load %arg1[%c0_6, %c0_7, %c0_8] : memref<2x8x16xf32, #tpu.memory_space<vmem>>, vector<2x1x16xf32>
    %7 = vector.shape_cast %6 : vector<2x1x16xf32> to vector<2x16xf32>
    %8 = arith.truncf %7 : vector<2x16xf32> to vector<2x16xbf16>
    %cst = arith.constant dense<0.000000e+00> : vector<2x128xf32>
    %9 = tpu.matmul %8, %3, %cst {dimension_numbers = #tpu.dot_dimension_numbers<[1], [0], [0], [1], [0, 0, 1, 1], [], []>} : vector<2x16xbf16>, vector<16x128xbf16>, vector<2x128xf32> -> vector<2x128xf32>
    %10 = vector.broadcast %5 : vector<1x128xf32> to vector<2x128xf32>
    %11 = arith.addf %9, %10 : vector<2x128xf32>
    %c0_9 = arith.constant 0 : index
    %c1 = arith.constant 1 : index
    %c0_10 = arith.constant 0 : index
    %12 = vector.load %arg1[%c0_9, %c1, %c0_10] : memref<2x8x16xf32, #tpu.memory_space<vmem>>, vector<2x1x16xf32>
    %13 = vector.shape_cast %12 : vector<2x1x16xf32> to vector<2x16xf32>
    %14 = arith.truncf %13 : vector<2x16xf32> to vector<2x16xbf16>
    %cst_11 = arith.constant dense<0.000000e+00> : vector<2x128xf32>
    %15 = tpu.matmul %14, %3, %cst_11 {dimension_numbers = #tpu.dot_dimension_numbers<[1], [0], [0], [1], [0, 0, 1, 1], [], []>} : vector<2x16xbf16>, vector<16x128xbf16>, vector<2x128xf32> -> vector<2x128xf32>
    %16 = vector.broadcast %5 : vector<1x128xf32> to vector<2x128xf32>
    %17 = arith.addf %15, %16 : vector<2x128xf32>
    %c0_12 = arith.constant 0 : index
    %c2 = arith.constant 2 : index
    %c0_13 = arith.constant 0 : index
    %18 = vector.load %arg1[%c0_12, %c2, %c0_13] : memref<2x8x16xf32, #tpu.memory_space<vmem>>, vector<2x1x16xf32>
    %19 = vector.shape_cast %18 : vector<2x1x16xf32> to vector<2x16xf32>
    %20 = arith.truncf %19 : vector<2x16xf32> to vector<2x16xbf16>
    %cst_14 = arith.constant dense<0.000000e+00> : vector<2x128xf32>
    %21 = tpu.matmul %20, %3, %cst_14 {dimension_numbers = #tpu.dot_dimension_numbers<[1], [0], [0], [1], [0, 0, 1, 1], [], []>} : vector<2x16xbf16>, vector<16x128xbf16>, vector<2x128xf32> -> vector<2x128xf32>
    %22 = vector.broadcast %5 : vector<1x128xf32> to vector<2x128xf32>
    %23 = arith.addf %21, %22 : vector<2x128xf32>
    %c0_15 = arith.constant 0 : index
    %c3 = arith.constant 3 : index
    %c0_16 = arith.constant 0 : index
    %24 = vector.load %arg1[%c0_15, %c3, %c0_16] : memref<2x8x16xf32, #tpu.memory_space<vmem>>, vector<2x1x16xf32>
    %25 = vector.shape_cast %24 : vector<2x1x16xf32> to vector<2x16xf32>
    %26 = arith.truncf %25 : vector<2x16xf32> to vector<2x16xbf16>
    %cst_17 = arith.constant dense<0.000000e+00> : vector<2x128xf32>
    %27 = tpu.matmul %26, %3, %cst_17 {dimension_numbers = #tpu.dot_dimension_numbers<[1], [0], [0], [1], [0, 0, 1, 1], [], []>} : vector<2x16xbf16>, vector<16x128xbf16>, vector<2x128xf32> -> vector<2x128xf32>
    %28 = vector.broadcast %5 : vector<1x128xf32> to vector<2x128xf32>
    %29 = arith.addf %27, %28 : vector<2x128xf32>
    %c0_18 = arith.constant 0 : index
    %c4 = arith.constant 4 : index
    %c0_19 = arith.constant 0 : index
    %30 = vector.load %arg1[%c0_18, %c4, %c0_19] : memref<2x8x16xf32, #tpu.memory_space<vmem>>, vector<2x1x16xf32>
    %31 = vector.shape_cast %30 : vector<2x1x16xf32> to vector<2x16xf32>
    %32 = arith.truncf %31 : vector<2x16xf32> to vector<2x16xbf16>
    %cst_20 = arith.constant dense<0.000000e+00> : vector<2x128xf32>
    %33 = tpu.matmul %32, %3, %cst_20 {dimension_numbers = #tpu.dot_dimension_numbers<[1], [0], [0], [1], [0, 0, 1, 1], [], []>} : vector<2x16xbf16>, vector<16x128xbf16>, vector<2x128xf32> -> vector<2x128xf32>
    %34 = vector.broadcast %5 : vector<1x128xf32> to vector<2x128xf32>
    %35 = arith.addf %33, %34 : vector<2x128xf32>
    %c0_21 = arith.constant 0 : index
    %c5 = arith.constant 5 : index
    %c0_22 = arith.constant 0 : index
    %36 = vector.load %arg1[%c0_21, %c5, %c0_22] : memref<2x8x16xf32, #tpu.memory_space<vmem>>, vector<2x1x16xf32>
    %37 = vector.shape_cast %36 : vector<2x1x16xf32> to vector<2x16xf32>
    %38 = arith.truncf %37 : vector<2x16xf32> to vector<2x16xbf16>
    %cst_23 = arith.constant dense<0.000000e+00> : vector<2x128xf32>
    %39 = tpu.matmul %38, %3, %cst_23 {dimension_numbers = #tpu.dot_dimension_numbers<[1], [0], [0], [1], [0, 0, 1, 1], [], []>} : vector<2x16xbf16>, vector<16x128xbf16>, vector<2x128xf32> -> vector<2x128xf32>
    %40 = vector.broadcast %5 : vector<1x128xf32> to vector<2x128xf32>
    %41 = arith.addf %39, %40 : vector<2x128xf32>
    %c0_24 = arith.constant 0 : index
    %c6 = arith.constant 6 : index
    %c0_25 = arith.constant 0 : index
    %42 = vector.load %arg1[%c0_24, %c6, %c0_25] : memref<2x8x16xf32, #tpu.memory_space<vmem>>, vector<2x1x16xf32>
    %43 = vector.shape_cast %42 : vector<2x1x16xf32> to vector<2x16xf32>
    %44 = arith.truncf %43 : vector<2x16xf32> to vector<2x16xbf16>
    %cst_26 = arith.constant dense<0.000000e+00> : vector<2x128xf32>
    %45 = tpu.matmul %44, %3, %cst_26 {dimension_numbers = #tpu.dot_dimension_numbers<[1], [0], [0], [1], [0, 0, 1, 1], [], []>} : vector<2x16xbf16>, vector<16x128xbf16>, vector<2x128xf32> -> vector<2x128xf32>
    %46 = vector.broadcast %5 : vector<1x128xf32> to vector<2x128xf32>
    %47 = arith.addf %45, %46 : vector<2x128xf32>
    %c0_27 = arith.constant 0 : index
    %c7 = arith.constant 7 : index
    %c0_28 = arith.constant 0 : index
    %48 = vector.load %arg1[%c0_27, %c7, %c0_28] : memref<2x8x16xf32, #tpu.memory_space<vmem>>, vector<2x1x16xf32>
    %49 = vector.shape_cast %48 : vector<2x1x16xf32> to vector<2x16xf32>
    %50 = arith.truncf %49 : vector<2x16xf32> to vector<2x16xbf16>
    %cst_29 = arith.constant dense<0.000000e+00> : vector<2x128xf32>
    %51 = tpu.matmul %50, %3, %cst_29 {dimension_numbers = #tpu.dot_dimension_numbers<[1], [0], [0], [1], [0, 0, 1, 1], [], []>} : vector<2x16xbf16>, vector<16x128xbf16>, vector<2x128xf32> -> vector<2x128xf32>
    %52 = vector.broadcast %5 : vector<1x128xf32> to vector<2x128xf32>
    %53 = arith.addf %51, %52 : vector<2x128xf32>
    %c0_30 = arith.constant 0 : index
    %c0_31 = arith.constant 0 : index
    %54 = vector.load %arg6[%c0_30, %c0_31] : memref<2x32xf32, #tpu.memory_space<vmem>>, vector<2x32xf32>
    %c0_32 = arith.constant 0 : index
    %c0_33 = arith.constant 0 : index
    %55 = vector.load %arg7[%c0_32, %c0_33] : memref<2x32xf32, #tpu.memory_space<vmem>>, vector<2x32xf32>
    %56 = arith.truncf %54 : vector<2x32xf32> to vector<2x32xbf16>
    %cst_34 = arith.constant dense<0.000000e+00> : vector<2x128xf32>
    %57 = tpu.matmul %56, %4, %cst_34 {dimension_numbers = #tpu.dot_dimension_numbers<[1], [0], [0], [1], [0, 0, 1, 1], [], []>} : vector<2x32xbf16>, vector<32x128xbf16>, vector<2x128xf32> -> vector<2x128xf32>
    %58 = arith.addf %11, %57 : vector<2x128xf32>
    %59 = vector.extract_strided_slice %58 {offsets = [0, 0], sizes = [2, 32], strides = [1, 1]} : vector<2x128xf32> to vector<2x32xf32>
    %cst_35 = arith.constant 5.000000e-01 : f32
    %60 = vector.broadcast %cst_35 : f32 to vector<2x32xf32>
    %61 = arith.mulf %60, %59 : vector<2x32xf32>
    %62 = math.tanh %61 : vector<2x32xf32>
    %cst_36 = arith.constant 5.000000e-01 : f32
    %63 = vector.broadcast %cst_36 : f32 to vector<2x32xf32>
    %64 = arith.mulf %63, %62 : vector<2x32xf32>
    %cst_37 = arith.constant 5.000000e-01 : f32
    %65 = vector.broadcast %cst_37 : f32 to vector<2x32xf32>
    %66 = arith.addf %64, %65 : vector<2x32xf32>
    %67 = vector.extract_strided_slice %58 {offsets = [0, 32], sizes = [2, 32], strides = [1, 1]} : vector<2x128xf32> to vector<2x32xf32>
    %cst_38 = arith.constant 5.000000e-01 : f32
    %68 = vector.broadcast %cst_38 : f32 to vector<2x32xf32>
    %69 = arith.mulf %68, %67 : vector<2x32xf32>
    %70 = math.tanh %69 : vector<2x32xf32>
    %cst_39 = arith.constant 5.000000e-01 : f32
    %71 = vector.broadcast %cst_39 : f32 to vector<2x32xf32>
    %72 = arith.mulf %71, %70 : vector<2x32xf32>
    %cst_40 = arith.constant 5.000000e-01 : f32
    %73 = vector.broadcast %cst_40 : f32 to vector<2x32xf32>
    %74 = arith.addf %72, %73 : vector<2x32xf32>
    %75 = vector.extract_strided_slice %58 {offsets = [0, 64], sizes = [2, 32], strides = [1, 1]} : vector<2x128xf32> to vector<2x32xf32>
    %76 = math.tanh %75 : vector<2x32xf32>
    %77 = vector.extract_strided_slice %58 {offsets = [0, 96], sizes = [2, 32], strides = [1, 1]} : vector<2x128xf32> to vector<2x32xf32>
    %cst_41 = arith.constant 5.000000e-01 : f32
    %78 = vector.broadcast %cst_41 : f32 to vector<2x32xf32>
    %79 = arith.mulf %78, %77 : vector<2x32xf32>
    %80 = math.tanh %79 : vector<2x32xf32>
    %cst_42 = arith.constant 5.000000e-01 : f32
    %81 = vector.broadcast %cst_42 : f32 to vector<2x32xf32>
    %82 = arith.mulf %81, %80 : vector<2x32xf32>
    %cst_43 = arith.constant 5.000000e-01 : f32
    %83 = vector.broadcast %cst_43 : f32 to vector<2x32xf32>
    %84 = arith.addf %82, %83 : vector<2x32xf32>
    %85 = arith.mulf %74, %55 : vector<2x32xf32>
    %86 = arith.mulf %66, %76 : vector<2x32xf32>
    %87 = arith.addf %85, %86 : vector<2x32xf32>
    %88 = math.tanh %87 : vector<2x32xf32>
    %89 = arith.mulf %84, %88 : vector<2x32xf32>
    %90 = arith.truncf %89 : vector<2x32xf32> to vector<2x32xbf16>
    %cst_44 = arith.constant dense<0.000000e+00> : vector<2x128xf32>
    %91 = tpu.matmul %90, %4, %cst_44 {dimension_numbers = #tpu.dot_dimension_numbers<[1], [0], [0], [1], [0, 0, 1, 1], [], []>} : vector<2x32xbf16>, vector<32x128xbf16>, vector<2x128xf32> -> vector<2x128xf32>
    %92 = arith.addf %17, %91 : vector<2x128xf32>
    %93 = vector.extract_strided_slice %92 {offsets = [0, 0], sizes = [2, 32], strides = [1, 1]} : vector<2x128xf32> to vector<2x32xf32>
    %cst_45 = arith.constant 5.000000e-01 : f32
    %94 = vector.broadcast %cst_45 : f32 to vector<2x32xf32>
    %95 = arith.mulf %94, %93 : vector<2x32xf32>
    %96 = math.tanh %95 : vector<2x32xf32>
    %cst_46 = arith.constant 5.000000e-01 : f32
    %97 = vector.broadcast %cst_46 : f32 to vector<2x32xf32>
    %98 = arith.mulf %97, %96 : vector<2x32xf32>
    %cst_47 = arith.constant 5.000000e-01 : f32
    %99 = vector.broadcast %cst_47 : f32 to vector<2x32xf32>
    %100 = arith.addf %98, %99 : vector<2x32xf32>
    %101 = vector.extract_strided_slice %92 {offsets = [0, 32], sizes = [2, 32], strides = [1, 1]} : vector<2x128xf32> to vector<2x32xf32>
    %cst_48 = arith.constant 5.000000e-01 : f32
    %102 = vector.broadcast %cst_48 : f32 to vector<2x32xf32>
    %103 = arith.mulf %102, %101 : vector<2x32xf32>
    %104 = math.tanh %103 : vector<2x32xf32>
    %cst_49 = arith.constant 5.000000e-01 : f32
    %105 = vector.broadcast %cst_49 : f32 to vector<2x32xf32>
    %106 = arith.mulf %105, %104 : vector<2x32xf32>
    %cst_50 = arith.constant 5.000000e-01 : f32
    %107 = vector.broadcast %cst_50 : f32 to vector<2x32xf32>
    %108 = arith.addf %106, %107 : vector<2x32xf32>
    %109 = vector.extract_strided_slice %92 {offsets = [0, 64], sizes = [2, 32], strides = [1, 1]} : vector<2x128xf32> to vector<2x32xf32>
    %110 = math.tanh %109 : vector<2x32xf32>
    %111 = vector.extract_strided_slice %92 {offsets = [0, 96], sizes = [2, 32], strides = [1, 1]} : vector<2x128xf32> to vector<2x32xf32>
    %cst_51 = arith.constant 5.000000e-01 : f32
    %112 = vector.broadcast %cst_51 : f32 to vector<2x32xf32>
    %113 = arith.mulf %112, %111 : vector<2x32xf32>
    %114 = math.tanh %113 : vector<2x32xf32>
    %cst_52 = arith.constant 5.000000e-01 : f32
    %115 = vector.broadcast %cst_52 : f32 to vector<2x32xf32>
    %116 = arith.mulf %115, %114 : vector<2x32xf32>
    %cst_53 = arith.constant 5.000000e-01 : f32
    %117 = vector.broadcast %cst_53 : f32 to vector<2x32xf32>
    %118 = arith.addf %116, %117 : vector<2x32xf32>
    %119 = arith.mulf %108, %87 : vector<2x32xf32>
    %120 = arith.mulf %100, %110 : vector<2x32xf32>
    %121 = arith.addf %119, %120 : vector<2x32xf32>
    %122 = math.tanh %121 : vector<2x32xf32>
    %123 = arith.mulf %118, %122 : vector<2x32xf32>
    %124 = arith.truncf %123 : vector<2x32xf32> to vector<2x32xbf16>
    %cst_54 = arith.constant dense<0.000000e+00> : vector<2x128xf32>
    %125 = tpu.matmul %124, %4, %cst_54 {dimension_numbers = #tpu.dot_dimension_numbers<[1], [0], [0], [1], [0, 0, 1, 1], [], []>} : vector<2x32xbf16>, vector<32x128xbf16>, vector<2x128xf32> -> vector<2x128xf32>
    %126 = arith.addf %23, %125 : vector<2x128xf32>
    %127 = vector.extract_strided_slice %126 {offsets = [0, 0], sizes = [2, 32], strides = [1, 1]} : vector<2x128xf32> to vector<2x32xf32>
    %cst_55 = arith.constant 5.000000e-01 : f32
    %128 = vector.broadcast %cst_55 : f32 to vector<2x32xf32>
    %129 = arith.mulf %128, %127 : vector<2x32xf32>
    %130 = math.tanh %129 : vector<2x32xf32>
    %cst_56 = arith.constant 5.000000e-01 : f32
    %131 = vector.broadcast %cst_56 : f32 to vector<2x32xf32>
    %132 = arith.mulf %131, %130 : vector<2x32xf32>
    %cst_57 = arith.constant 5.000000e-01 : f32
    %133 = vector.broadcast %cst_57 : f32 to vector<2x32xf32>
    %134 = arith.addf %132, %133 : vector<2x32xf32>
    %135 = vector.extract_strided_slice %126 {offsets = [0, 32], sizes = [2, 32], strides = [1, 1]} : vector<2x128xf32> to vector<2x32xf32>
    %cst_58 = arith.constant 5.000000e-01 : f32
    %136 = vector.broadcast %cst_58 : f32 to vector<2x32xf32>
    %137 = arith.mulf %136, %135 : vector<2x32xf32>
    %138 = math.tanh %137 : vector<2x32xf32>
    %cst_59 = arith.constant 5.000000e-01 : f32
    %139 = vector.broadcast %cst_59 : f32 to vector<2x32xf32>
    %140 = arith.mulf %139, %138 : vector<2x32xf32>
    %cst_60 = arith.constant 5.000000e-01 : f32
    %141 = vector.broadcast %cst_60 : f32 to vector<2x32xf32>
    %142 = arith.addf %140, %141 : vector<2x32xf32>
    %143 = vector.extract_strided_slice %126 {offsets = [0, 64], sizes = [2, 32], strides = [1, 1]} : vector<2x128xf32> to vector<2x32xf32>
    %144 = math.tanh %143 : vector<2x32xf32>
    %145 = vector.extract_strided_slice %126 {offsets = [0, 96], sizes = [2, 32], strides = [1, 1]} : vector<2x128xf32> to vector<2x32xf32>
    %cst_61 = arith.constant 5.000000e-01 : f32
    %146 = vector.broadcast %cst_61 : f32 to vector<2x32xf32>
    %147 = arith.mulf %146, %145 : vector<2x32xf32>
    %148 = math.tanh %147 : vector<2x32xf32>
    %cst_62 = arith.constant 5.000000e-01 : f32
    %149 = vector.broadcast %cst_62 : f32 to vector<2x32xf32>
    %150 = arith.mulf %149, %148 : vector<2x32xf32>
    %cst_63 = arith.constant 5.000000e-01 : f32
    %151 = vector.broadcast %cst_63 : f32 to vector<2x32xf32>
    %152 = arith.addf %150, %151 : vector<2x32xf32>
    %153 = arith.mulf %142, %121 : vector<2x32xf32>
    %154 = arith.mulf %134, %144 : vector<2x32xf32>
    %155 = arith.addf %153, %154 : vector<2x32xf32>
    %156 = math.tanh %155 : vector<2x32xf32>
    %157 = arith.mulf %152, %156 : vector<2x32xf32>
    %158 = arith.truncf %157 : vector<2x32xf32> to vector<2x32xbf16>
    %cst_64 = arith.constant dense<0.000000e+00> : vector<2x128xf32>
    %159 = tpu.matmul %158, %4, %cst_64 {dimension_numbers = #tpu.dot_dimension_numbers<[1], [0], [0], [1], [0, 0, 1, 1], [], []>} : vector<2x32xbf16>, vector<32x128xbf16>, vector<2x128xf32> -> vector<2x128xf32>
    %160 = arith.addf %29, %159 : vector<2x128xf32>
    %161 = vector.extract_strided_slice %160 {offsets = [0, 0], sizes = [2, 32], strides = [1, 1]} : vector<2x128xf32> to vector<2x32xf32>
    %cst_65 = arith.constant 5.000000e-01 : f32
    %162 = vector.broadcast %cst_65 : f32 to vector<2x32xf32>
    %163 = arith.mulf %162, %161 : vector<2x32xf32>
    %164 = math.tanh %163 : vector<2x32xf32>
    %cst_66 = arith.constant 5.000000e-01 : f32
    %165 = vector.broadcast %cst_66 : f32 to vector<2x32xf32>
    %166 = arith.mulf %165, %164 : vector<2x32xf32>
    %cst_67 = arith.constant 5.000000e-01 : f32
    %167 = vector.broadcast %cst_67 : f32 to vector<2x32xf32>
    %168 = arith.addf %166, %167 : vector<2x32xf32>
    %169 = vector.extract_strided_slice %160 {offsets = [0, 32], sizes = [2, 32], strides = [1, 1]} : vector<2x128xf32> to vector<2x32xf32>
    %cst_68 = arith.constant 5.000000e-01 : f32
    %170 = vector.broadcast %cst_68 : f32 to vector<2x32xf32>
    %171 = arith.mulf %170, %169 : vector<2x32xf32>
    %172 = math.tanh %171 : vector<2x32xf32>
    %cst_69 = arith.constant 5.000000e-01 : f32
    %173 = vector.broadcast %cst_69 : f32 to vector<2x32xf32>
    %174 = arith.mulf %173, %172 : vector<2x32xf32>
    %cst_70 = arith.constant 5.000000e-01 : f32
    %175 = vector.broadcast %cst_70 : f32 to vector<2x32xf32>
    %176 = arith.addf %174, %175 : vector<2x32xf32>
    %177 = vector.extract_strided_slice %160 {offsets = [0, 64], sizes = [2, 32], strides = [1, 1]} : vector<2x128xf32> to vector<2x32xf32>
    %178 = math.tanh %177 : vector<2x32xf32>
    %179 = vector.extract_strided_slice %160 {offsets = [0, 96], sizes = [2, 32], strides = [1, 1]} : vector<2x128xf32> to vector<2x32xf32>
    %cst_71 = arith.constant 5.000000e-01 : f32
    %180 = vector.broadcast %cst_71 : f32 to vector<2x32xf32>
    %181 = arith.mulf %180, %179 : vector<2x32xf32>
    %182 = math.tanh %181 : vector<2x32xf32>
    %cst_72 = arith.constant 5.000000e-01 : f32
    %183 = vector.broadcast %cst_72 : f32 to vector<2x32xf32>
    %184 = arith.mulf %183, %182 : vector<2x32xf32>
    %cst_73 = arith.constant 5.000000e-01 : f32
    %185 = vector.broadcast %cst_73 : f32 to vector<2x32xf32>
    %186 = arith.addf %184, %185 : vector<2x32xf32>
    %187 = arith.mulf %176, %155 : vector<2x32xf32>
    %188 = arith.mulf %168, %178 : vector<2x32xf32>
    %189 = arith.addf %187, %188 : vector<2x32xf32>
    %190 = math.tanh %189 : vector<2x32xf32>
    %191 = arith.mulf %186, %190 : vector<2x32xf32>
    %192 = arith.truncf %191 : vector<2x32xf32> to vector<2x32xbf16>
    %cst_74 = arith.constant dense<0.000000e+00> : vector<2x128xf32>
    %193 = tpu.matmul %192, %4, %cst_74 {dimension_numbers = #tpu.dot_dimension_numbers<[1], [0], [0], [1], [0, 0, 1, 1], [], []>} : vector<2x32xbf16>, vector<32x128xbf16>, vector<2x128xf32> -> vector<2x128xf32>
    %194 = arith.addf %35, %193 : vector<2x128xf32>
    %195 = vector.extract_strided_slice %194 {offsets = [0, 0], sizes = [2, 32], strides = [1, 1]} : vector<2x128xf32> to vector<2x32xf32>
    %cst_75 = arith.constant 5.000000e-01 : f32
    %196 = vector.broadcast %cst_75 : f32 to vector<2x32xf32>
    %197 = arith.mulf %196, %195 : vector<2x32xf32>
    %198 = math.tanh %197 : vector<2x32xf32>
    %cst_76 = arith.constant 5.000000e-01 : f32
    %199 = vector.broadcast %cst_76 : f32 to vector<2x32xf32>
    %200 = arith.mulf %199, %198 : vector<2x32xf32>
    %cst_77 = arith.constant 5.000000e-01 : f32
    %201 = vector.broadcast %cst_77 : f32 to vector<2x32xf32>
    %202 = arith.addf %200, %201 : vector<2x32xf32>
    %203 = vector.extract_strided_slice %194 {offsets = [0, 32], sizes = [2, 32], strides = [1, 1]} : vector<2x128xf32> to vector<2x32xf32>
    %cst_78 = arith.constant 5.000000e-01 : f32
    %204 = vector.broadcast %cst_78 : f32 to vector<2x32xf32>
    %205 = arith.mulf %204, %203 : vector<2x32xf32>
    %206 = math.tanh %205 : vector<2x32xf32>
    %cst_79 = arith.constant 5.000000e-01 : f32
    %207 = vector.broadcast %cst_79 : f32 to vector<2x32xf32>
    %208 = arith.mulf %207, %206 : vector<2x32xf32>
    %cst_80 = arith.constant 5.000000e-01 : f32
    %209 = vector.broadcast %cst_80 : f32 to vector<2x32xf32>
    %210 = arith.addf %208, %209 : vector<2x32xf32>
    %211 = vector.extract_strided_slice %194 {offsets = [0, 64], sizes = [2, 32], strides = [1, 1]} : vector<2x128xf32> to vector<2x32xf32>
    %212 = math.tanh %211 : vector<2x32xf32>
    %213 = vector.extract_strided_slice %194 {offsets = [0, 96], sizes = [2, 32], strides = [1, 1]} : vector<2x128xf32> to vector<2x32xf32>
    %cst_81 = arith.constant 5.000000e-01 : f32
    %214 = vector.broadcast %cst_81 : f32 to vector<2x32xf32>
    %215 = arith.mulf %214, %213 : vector<2x32xf32>
    %216 = math.tanh %215 : vector<2x32xf32>
    %cst_82 = arith.constant 5.000000e-01 : f32
    %217 = vector.broadcast %cst_82 : f32 to vector<2x32xf32>
    %218 = arith.mulf %217, %216 : vector<2x32xf32>
    %cst_83 = arith.constant 5.000000e-01 : f32
    %219 = vector.broadcast %cst_83 : f32 to vector<2x32xf32>
    %220 = arith.addf %218, %219 : vector<2x32xf32>
    %221 = arith.mulf %210, %189 : vector<2x32xf32>
    %222 = arith.mulf %202, %212 : vector<2x32xf32>
    %223 = arith.addf %221, %222 : vector<2x32xf32>
    %224 = math.tanh %223 : vector<2x32xf32>
    %225 = arith.mulf %220, %224 : vector<2x32xf32>
    %226 = arith.truncf %225 : vector<2x32xf32> to vector<2x32xbf16>
    %cst_84 = arith.constant dense<0.000000e+00> : vector<2x128xf32>
    %227 = tpu.matmul %226, %4, %cst_84 {dimension_numbers = #tpu.dot_dimension_numbers<[1], [0], [0], [1], [0, 0, 1, 1], [], []>} : vector<2x32xbf16>, vector<32x128xbf16>, vector<2x128xf32> -> vector<2x128xf32>
    %228 = arith.addf %41, %227 : vector<2x128xf32>
    %229 = vector.extract_strided_slice %228 {offsets = [0, 0], sizes = [2, 32], strides = [1, 1]} : vector<2x128xf32> to vector<2x32xf32>
    %cst_85 = arith.constant 5.000000e-01 : f32
    %230 = vector.broadcast %cst_85 : f32 to vector<2x32xf32>
    %231 = arith.mulf %230, %229 : vector<2x32xf32>
    %232 = math.tanh %231 : vector<2x32xf32>
    %cst_86 = arith.constant 5.000000e-01 : f32
    %233 = vector.broadcast %cst_86 : f32 to vector<2x32xf32>
    %234 = arith.mulf %233, %232 : vector<2x32xf32>
    %cst_87 = arith.constant 5.000000e-01 : f32
    %235 = vector.broadcast %cst_87 : f32 to vector<2x32xf32>
    %236 = arith.addf %234, %235 : vector<2x32xf32>
    %237 = vector.extract_strided_slice %228 {offsets = [0, 32], sizes = [2, 32], strides = [1, 1]} : vector<2x128xf32> to vector<2x32xf32>
    %cst_88 = arith.constant 5.000000e-01 : f32
    %238 = vector.broadcast %cst_88 : f32 to vector<2x32xf32>
    %239 = arith.mulf %238, %237 : vector<2x32xf32>
    %240 = math.tanh %239 : vector<2x32xf32>
    %cst_89 = arith.constant 5.000000e-01 : f32
    %241 = vector.broadcast %cst_89 : f32 to vector<2x32xf32>
    %242 = arith.mulf %241, %240 : vector<2x32xf32>
    %cst_90 = arith.constant 5.000000e-01 : f32
    %243 = vector.broadcast %cst_90 : f32 to vector<2x32xf32>
    %244 = arith.addf %242, %243 : vector<2x32xf32>
    %245 = vector.extract_strided_slice %228 {offsets = [0, 64], sizes = [2, 32], strides = [1, 1]} : vector<2x128xf32> to vector<2x32xf32>
    %246 = math.tanh %245 : vector<2x32xf32>
    %247 = vector.extract_strided_slice %228 {offsets = [0, 96], sizes = [2, 32], strides = [1, 1]} : vector<2x128xf32> to vector<2x32xf32>
    %cst_91 = arith.constant 5.000000e-01 : f32
    %248 = vector.broadcast %cst_91 : f32 to vector<2x32xf32>
    %249 = arith.mulf %248, %247 : vector<2x32xf32>
    %250 = math.tanh %249 : vector<2x32xf32>
    %cst_92 = arith.constant 5.000000e-01 : f32
    %251 = vector.broadcast %cst_92 : f32 to vector<2x32xf32>
    %252 = arith.mulf %251, %250 : vector<2x32xf32>
    %cst_93 = arith.constant 5.000000e-01 : f32
    %253 = vector.broadcast %cst_93 : f32 to vector<2x32xf32>
    %254 = arith.addf %252, %253 : vector<2x32xf32>
    %255 = arith.mulf %244, %223 : vector<2x32xf32>
    %256 = arith.mulf %236, %246 : vector<2x32xf32>
    %257 = arith.addf %255, %256 : vector<2x32xf32>
    %258 = math.tanh %257 : vector<2x32xf32>
    %259 = arith.mulf %254, %258 : vector<2x32xf32>
    %260 = arith.truncf %259 : vector<2x32xf32> to vector<2x32xbf16>
    %cst_94 = arith.constant dense<0.000000e+00> : vector<2x128xf32>
    %261 = tpu.matmul %260, %4, %cst_94 {dimension_numbers = #tpu.dot_dimension_numbers<[1], [0], [0], [1], [0, 0, 1, 1], [], []>} : vector<2x32xbf16>, vector<32x128xbf16>, vector<2x128xf32> -> vector<2x128xf32>
    %262 = arith.addf %47, %261 : vector<2x128xf32>
    %263 = vector.extract_strided_slice %262 {offsets = [0, 0], sizes = [2, 32], strides = [1, 1]} : vector<2x128xf32> to vector<2x32xf32>
    %cst_95 = arith.constant 5.000000e-01 : f32
    %264 = vector.broadcast %cst_95 : f32 to vector<2x32xf32>
    %265 = arith.mulf %264, %263 : vector<2x32xf32>
    %266 = math.tanh %265 : vector<2x32xf32>
    %cst_96 = arith.constant 5.000000e-01 : f32
    %267 = vector.broadcast %cst_96 : f32 to vector<2x32xf32>
    %268 = arith.mulf %267, %266 : vector<2x32xf32>
    %cst_97 = arith.constant 5.000000e-01 : f32
    %269 = vector.broadcast %cst_97 : f32 to vector<2x32xf32>
    %270 = arith.addf %268, %269 : vector<2x32xf32>
    %271 = vector.extract_strided_slice %262 {offsets = [0, 32], sizes = [2, 32], strides = [1, 1]} : vector<2x128xf32> to vector<2x32xf32>
    %cst_98 = arith.constant 5.000000e-01 : f32
    %272 = vector.broadcast %cst_98 : f32 to vector<2x32xf32>
    %273 = arith.mulf %272, %271 : vector<2x32xf32>
    %274 = math.tanh %273 : vector<2x32xf32>
    %cst_99 = arith.constant 5.000000e-01 : f32
    %275 = vector.broadcast %cst_99 : f32 to vector<2x32xf32>
    %276 = arith.mulf %275, %274 : vector<2x32xf32>
    %cst_100 = arith.constant 5.000000e-01 : f32
    %277 = vector.broadcast %cst_100 : f32 to vector<2x32xf32>
    %278 = arith.addf %276, %277 : vector<2x32xf32>
    %279 = vector.extract_strided_slice %262 {offsets = [0, 64], sizes = [2, 32], strides = [1, 1]} : vector<2x128xf32> to vector<2x32xf32>
    %280 = math.tanh %279 : vector<2x32xf32>
    %281 = vector.extract_strided_slice %262 {offsets = [0, 96], sizes = [2, 32], strides = [1, 1]} : vector<2x128xf32> to vector<2x32xf32>
    %cst_101 = arith.constant 5.000000e-01 : f32
    %282 = vector.broadcast %cst_101 : f32 to vector<2x32xf32>
    %283 = arith.mulf %282, %281 : vector<2x32xf32>
    %284 = math.tanh %283 : vector<2x32xf32>
    %cst_102 = arith.constant 5.000000e-01 : f32
    %285 = vector.broadcast %cst_102 : f32 to vector<2x32xf32>
    %286 = arith.mulf %285, %284 : vector<2x32xf32>
    %cst_103 = arith.constant 5.000000e-01 : f32
    %287 = vector.broadcast %cst_103 : f32 to vector<2x32xf32>
    %288 = arith.addf %286, %287 : vector<2x32xf32>
    %289 = arith.mulf %278, %257 : vector<2x32xf32>
    %290 = arith.mulf %270, %280 : vector<2x32xf32>
    %291 = arith.addf %289, %290 : vector<2x32xf32>
    %292 = math.tanh %291 : vector<2x32xf32>
    %293 = arith.mulf %288, %292 : vector<2x32xf32>
    %294 = arith.truncf %293 : vector<2x32xf32> to vector<2x32xbf16>
    %cst_104 = arith.constant dense<0.000000e+00> : vector<2x128xf32>
    %295 = tpu.matmul %294, %4, %cst_104 {dimension_numbers = #tpu.dot_dimension_numbers<[1], [0], [0], [1], [0, 0, 1, 1], [], []>} : vector<2x32xbf16>, vector<32x128xbf16>, vector<2x128xf32> -> vector<2x128xf32>
    %296 = arith.addf %53, %295 : vector<2x128xf32>
    %297 = vector.extract_strided_slice %296 {offsets = [0, 0], sizes = [2, 32], strides = [1, 1]} : vector<2x128xf32> to vector<2x32xf32>
    %cst_105 = arith.constant 5.000000e-01 : f32
    %298 = vector.broadcast %cst_105 : f32 to vector<2x32xf32>
    %299 = arith.mulf %298, %297 : vector<2x32xf32>
    %300 = math.tanh %299 : vector<2x32xf32>
    %cst_106 = arith.constant 5.000000e-01 : f32
    %301 = vector.broadcast %cst_106 : f32 to vector<2x32xf32>
    %302 = arith.mulf %301, %300 : vector<2x32xf32>
    %cst_107 = arith.constant 5.000000e-01 : f32
    %303 = vector.broadcast %cst_107 : f32 to vector<2x32xf32>
    %304 = arith.addf %302, %303 : vector<2x32xf32>
    %305 = vector.extract_strided_slice %296 {offsets = [0, 32], sizes = [2, 32], strides = [1, 1]} : vector<2x128xf32> to vector<2x32xf32>
    %cst_108 = arith.constant 5.000000e-01 : f32
    %306 = vector.broadcast %cst_108 : f32 to vector<2x32xf32>
    %307 = arith.mulf %306, %305 : vector<2x32xf32>
    %308 = math.tanh %307 : vector<2x32xf32>
    %cst_109 = arith.constant 5.000000e-01 : f32
    %309 = vector.broadcast %cst_109 : f32 to vector<2x32xf32>
    %310 = arith.mulf %309, %308 : vector<2x32xf32>
    %cst_110 = arith.constant 5.000000e-01 : f32
    %311 = vector.broadcast %cst_110 : f32 to vector<2x32xf32>
    %312 = arith.addf %310, %311 : vector<2x32xf32>
    %313 = vector.extract_strided_slice %296 {offsets = [0, 64], sizes = [2, 32], strides = [1, 1]} : vector<2x128xf32> to vector<2x32xf32>
    %314 = math.tanh %313 : vector<2x32xf32>
    %315 = vector.extract_strided_slice %296 {offsets = [0, 96], sizes = [2, 32], strides = [1, 1]} : vector<2x128xf32> to vector<2x32xf32>
    %cst_111 = arith.constant 5.000000e-01 : f32
    %316 = vector.broadcast %cst_111 : f32 to vector<2x32xf32>
    %317 = arith.mulf %316, %315 : vector<2x32xf32>
    %318 = math.tanh %317 : vector<2x32xf32>
    %cst_112 = arith.constant 5.000000e-01 : f32
    %319 = vector.broadcast %cst_112 : f32 to vector<2x32xf32>
    %320 = arith.mulf %319, %318 : vector<2x32xf32>
    %cst_113 = arith.constant 5.000000e-01 : f32
    %321 = vector.broadcast %cst_113 : f32 to vector<2x32xf32>
    %322 = arith.addf %320, %321 : vector<2x32xf32>
    %323 = arith.mulf %312, %291 : vector<2x32xf32>
    %324 = arith.mulf %304, %314 : vector<2x32xf32>
    %325 = arith.addf %323, %324 : vector<2x32xf32>
    %326 = math.tanh %325 : vector<2x32xf32>
    %327 = arith.mulf %322, %326 : vector<2x32xf32>
    %c0_114 = arith.constant 0 : index
    %c0_115 = arith.constant 0 : index
    %328 = vector.load %arg6[%c0_114, %c0_115] : memref<2x32xf32, #tpu.memory_space<vmem>>, vector<2x32xf32>
    tpu.vector_store %arg6[%c0_114, %c0_115], %327 {strides = array<i32>} : memref<2x32xf32, #tpu.memory_space<vmem>>, vector<2x32xf32>,
    %c0_116 = arith.constant 0 : index
    %c0_117 = arith.constant 0 : index
    %329 = vector.load %arg7[%c0_116, %c0_117] : memref<2x32xf32, #tpu.memory_space<vmem>>, vector<2x32xf32>
    tpu.vector_store %arg7[%c0_116, %c0_117], %325 {strides = array<i32>} : memref<2x32xf32, #tpu.memory_space<vmem>>, vector<2x32xf32>,
    %c0_i32_118 = arith.constant 0 : i32
    %330 = arith.cmpi eq, %arg0, %c0_i32_118 : i32
    %331 = arith.extui %330 : i1 to i32
    %c0_i32_119 = arith.constant 0 : i32
    %332 = arith.cmpi ne, %331, %c0_i32_119 : i32
    scf.if %332 {
      %c0_120 = arith.constant 0 : index
      %c0_121 = arith.constant 0 : index
      %333 = vector.load %arg5[%c0_120, %c0_121] : memref<2x32xf32, #tpu.memory_space<vmem>>, vector<2x32xf32>
      tpu.vector_store %arg5[%c0_120, %c0_121], %327 {strides = array<i32>} : memref<2x32xf32, #tpu.memory_space<vmem>>, vector<2x32xf32>,
    } else {
    }
    return
  }
  func.func @transform_0(%arg0: i32) -> (i32, i32, i32) {
    %c0_i32 = arith.constant 0 : i32
    %c0_i32_0 = arith.constant 0 : i32
    %c0_i32_1 = arith.constant 0 : i32
    return %c0_i32, %arg0, %c0_i32_0 : i32, i32, i32
  }
  func.func @transform_1(%arg0: i32) -> (i32, i32) {
    %c0_i32 = arith.constant 0 : i32
    %c0_i32_0 = arith.constant 0 : i32
    %c0_i32_1 = arith.constant 0 : i32
    return %c0_i32, %c0_i32_0 : i32, i32
  }
  func.func @transform_2(%arg0: i32) -> (i32, i32) {
    %c0_i32 = arith.constant 0 : i32
    %c0_i32_0 = arith.constant 0 : i32
    %c0_i32_1 = arith.constant 0 : i32
    return %c0_i32, %c0_i32_0 : i32, i32
  }
  func.func @transform_3(%arg0: i32) -> (i32, i32) {
    %c0_i32 = arith.constant 0 : i32
    %c0_i32_0 = arith.constant 0 : i32
    %c0_i32_1 = arith.constant 0 : i32
    return %c0_i32, %c0_i32_0 : i32, i32
  }
  func.func @transform_4(%arg0: i32) -> (i32, i32) {
    %c0_i32 = arith.constant 0 : i32
    %c0_i32_0 = arith.constant 0 : i32
    %c0_i32_1 = arith.constant 0 : i32
    return %c0_i32, %c0_i32_0 : i32, i32
  }
}

module attributes {stable_mosaic.version = 11 : i64} {
  func.func @_lstm_fused_kernel(%arg0: i32, %arg1: memref<2x8x16xf32, #tpu.memory_space<vmem>>, %arg2: memref<16x128xbf16, #tpu.memory_space<vmem>>, %arg3: memref<32x128xbf16, #tpu.memory_space<vmem>>, %arg4: memref<1x128xf32, #tpu.memory_space<vmem>>, %arg5: memref<2x32xf32, #tpu.memory_space<vmem>>, %arg6: memref<2x32xf32, #tpu.memory_space<vmem>>, %arg7: memref<2x32xf32, #tpu.memory_space<vmem>>) attributes {dimension_semantics = [#tpu.dimension_semantics<arbitrary>], iteration_bounds = array<i64: 1>, scalar_prefetch = 0 : i64, scratch_operands = 2 : i64, tpu.core_type = #tpu.core_type<tc>, window_params = [{transform_indices = @transform_0, window_bounds = array<i64: 2, 8, 16>}, {pipeline_mode = #tpu.pipeline_mode<synchronous>, transform_indices = @transform_1, window_bounds = array<i64: 16, 128>}, {pipeline_mode = #tpu.pipeline_mode<synchronous>, transform_indices = @transform_2, window_bounds = array<i64: 32, 128>}, {pipeline_mode = #tpu.pipeline_mode<synchronous>, transform_indices = @transform_3, window_bounds = array<i64: 1, 128>}, {pipeline_mode = #tpu.pipeline_mode<synchronous>, transform_indices = @transform_4, window_bounds = array<i64: 2, 32>}]} {
    %c0_i32 = arith.constant 0 : i32
    %0 = arith.cmpi eq, %arg0, %c0_i32 : i32
    %1 = arith.extui %0 : i1 to i32
    %c0_i32_0 = arith.constant 0 : i32
    %2 = arith.cmpi ne, %1, %c0_i32_0 : i32
    scf.if %2 {
      %cst_120 = arith.constant 0.000000e+00 : f32
      %333 = vector.broadcast %cst_120 : f32 to vector<2x32xf32>
      %c0_121 = arith.constant 0 : index
      %c0_122 = arith.constant 0 : index
      %334 = vector.load %arg6[%c0_121, %c0_122] : memref<2x32xf32, #tpu.memory_space<vmem>>, vector<2x32xf32>
      tpu.vector_store %arg6[%c0_121, %c0_122], %333 {strides = array<i32>} : memref<2x32xf32, #tpu.memory_space<vmem>>, vector<2x32xf32>,
      %cst_123 = arith.constant 0.000000e+00 : f32
      %335 = vector.broadcast %cst_123 : f32 to vector<2x32xf32>
      %c0_124 = arith.constant 0 : index
      %c0_125 = arith.constant 0 : index
      %336 = vector.load %arg7[%c0_124, %c0_125] : memref<2x32xf32, #tpu.memory_space<vmem>>, vector<2x32xf32>
      tpu.vector_store %arg7[%c0_124, %c0_125], %335 {strides = array<i32>} : memref<2x32xf32, #tpu.memory_space<vmem>>, vector<2x32xf32>,
    } else {
    }
    %c0 = arith.constant 0 : index
    %c0_1 = arith.constant 0 : index
    %3 = vector.load %arg2[%c0, %c0_1] : memref<16x128xbf16, #tpu.memory_space<vmem>>, vector<16x128xbf16>
    %c0_2 = arith.constant 0 : index
    %c0_3 = arith.constant 0 : index
    %4 = vector.load %arg3[%c0_2, %c0_3] : memref<32x128xbf16, #tpu.memory_space<vmem>>, vector<32x128xbf16>
    %c0_4 = arith.constant 0 : index
    %c0_5 = arith.constant 0 : index
    %5 = vector.load %arg4[%c0_4, %c0_5] : memref<1x128xf32, #tpu.memory_space<vmem>>, vector<1x128xf32>
    %c0_6 = arith.constant 0 : index
    %c0_7 = arith.constant 0 : index
    %c0_8 = arith.constant 0 : index
    %6 = vector.load %arg1[%c0_6, %c0_7, %c0_8] : memref<2x8x16xf32, #tpu.memory_space<vmem>>, vector<2x1x16xf32>
    %7 = vector.shape_cast %6 : vector<2x1x16xf32> to vector<2x16xf32>
    %8 = arith.truncf %7 : vector<2x16xf32> to vector<2x16xbf16>
    %cst = arith.constant dense<0.000000e+00> : vector<2x128xf32>
    %9 = tpu.matmul %8, %3, %cst {dimension_numbers = #tpu.dot_dimension_numbers<[1], [0], [0], [1], [0, 0, 1, 1], [], []>} : vector<2x16xbf16>, vector<16x128xbf16>, vector<2x128xf32> -> vector<2x128xf32>
    %10 = vector.broadcast %5 : vector<1x128xf32> to vector<2x128xf32>
    %11 = arith.addf %9, %10 : vector<2x128xf32>
    %c0_9 = arith.constant 0 : index
    %c1 = arith.constant 1 : index
    %c0_10 = arith.constant 0 : index
    %12 = vector.load %arg1[%c0_9, %c1, %c0_10] : memref<2x8x16xf32, #tpu.memory_space<vmem>>, vector<2x1x16xf32>
    %13 = vector.shape_cast %12 : vector<2x1x16xf32> to vector<2x16xf32>
    %14 = arith.truncf %13 : vector<2x16xf32> to vector<2x16xbf16>
    %cst_11 = arith.constant dense<0.000000e+00> : vector<2x128xf32>
    %15 = tpu.matmul %14, %3, %cst_11 {dimension_numbers = #tpu.dot_dimension_numbers<[1], [0], [0], [1], [0, 0, 1, 1], [], []>} : vector<2x16xbf16>, vector<16x128xbf16>, vector<2x128xf32> -> vector<2x128xf32>
    %16 = vector.broadcast %5 : vector<1x128xf32> to vector<2x128xf32>
    %17 = arith.addf %15, %16 : vector<2x128xf32>
    %c0_12 = arith.constant 0 : index
    %c2 = arith.constant 2 : index
    %c0_13 = arith.constant 0 : index
    %18 = vector.load %arg1[%c0_12, %c2, %c0_13] : memref<2x8x16xf32, #tpu.memory_space<vmem>>, vector<2x1x16xf32>
    %19 = vector.shape_cast %18 : vector<2x1x16xf32> to vector<2x16xf32>
    %20 = arith.truncf %19 : vector<2x16xf32> to vector<2x16xbf16>
    %cst_14 = arith.constant dense<0.000000e+00> : vector<2x128xf32>
    %21 = tpu.matmul %20, %3, %cst_14 {dimension_numbers = #tpu.dot_dimension_numbers<[1], [0], [0], [1], [0, 0, 1, 1], [], []>} : vector<2x16xbf16>, vector<16x128xbf16>, vector<2x128xf32> -> vector<2x128xf32>
    %22 = vector.broadcast %5 : vector<1x128xf32> to vector<2x128xf32>
    %23 = arith.addf %21, %22 : vector<2x128xf32>
    %c0_15 = arith.constant 0 : index
    %c3 = arith.constant 3 : index
    %c0_16 = arith.constant 0 : index
    %24 = vector.load %arg1[%c0_15, %c3, %c0_16] : memref<2x8x16xf32, #tpu.memory_space<vmem>>, vector<2x1x16xf32>
    %25 = vector.shape_cast %24 : vector<2x1x16xf32> to vector<2x16xf32>
    %26 = arith.truncf %25 : vector<2x16xf32> to vector<2x16xbf16>
    %cst_17 = arith.constant dense<0.000000e+00> : vector<2x128xf32>
    %27 = tpu.matmul %26, %3, %cst_17 {dimension_numbers = #tpu.dot_dimension_numbers<[1], [0], [0], [1], [0, 0, 1, 1], [], []>} : vector<2x16xbf16>, vector<16x128xbf16>, vector<2x128xf32> -> vector<2x128xf32>
    %28 = vector.broadcast %5 : vector<1x128xf32> to vector<2x128xf32>
    %29 = arith.addf %27, %28 : vector<2x128xf32>
    %c0_18 = arith.constant 0 : index
    %c4 = arith.constant 4 : index
    %c0_19 = arith.constant 0 : index
    %30 = vector.load %arg1[%c0_18, %c4, %c0_19] : memref<2x8x16xf32, #tpu.memory_space<vmem>>, vector<2x1x16xf32>
    %31 = vector.shape_cast %30 : vector<2x1x16xf32> to vector<2x16xf32>
    %32 = arith.truncf %31 : vector<2x16xf32> to vector<2x16xbf16>
    %cst_20 = arith.constant dense<0.000000e+00> : vector<2x128xf32>
    %33 = tpu.matmul %32, %3, %cst_20 {dimension_numbers = #tpu.dot_dimension_numbers<[1], [0], [0], [1], [0, 0, 1, 1], [], []>} : vector<2x16xbf16>, vector<16x128xbf16>, vector<2x128xf32> -> vector<2x128xf32>
    %34 = vector.broadcast %5 : vector<1x128xf32> to vector<2x128xf32>
    %35 = arith.addf %33, %34 : vector<2x128xf32>
    %c0_21 = arith.constant 0 : index
    %c5 = arith.constant 5 : index
    %c0_22 = arith.constant 0 : index
    %36 = vector.load %arg1[%c0_21, %c5, %c0_22] : memref<2x8x16xf32, #tpu.memory_space<vmem>>, vector<2x1x16xf32>
    %37 = vector.shape_cast %36 : vector<2x1x16xf32> to vector<2x16xf32>
    %38 = arith.truncf %37 : vector<2x16xf32> to vector<2x16xbf16>
    %cst_23 = arith.constant dense<0.000000e+00> : vector<2x128xf32>
    %39 = tpu.matmul %38, %3, %cst_23 {dimension_numbers = #tpu.dot_dimension_numbers<[1], [0], [0], [1], [0, 0, 1, 1], [], []>} : vector<2x16xbf16>, vector<16x128xbf16>, vector<2x128xf32> -> vector<2x128xf32>
    %40 = vector.broadcast %5 : vector<1x128xf32> to vector<2x128xf32>
    %41 = arith.addf %39, %40 : vector<2x128xf32>
    %c0_24 = arith.constant 0 : index
    %c6 = arith.constant 6 : index
    %c0_25 = arith.constant 0 : index
    %42 = vector.load %arg1[%c0_24, %c6, %c0_25] : memref<2x8x16xf32, #tpu.memory_space<vmem>>, vector<2x1x16xf32>
    %43 = vector.shape_cast %42 : vector<2x1x16xf32> to vector<2x16xf32>
    %44 = arith.truncf %43 : vector<2x16xf32> to vector<2x16xbf16>
    %cst_26 = arith.constant dense<0.000000e+00> : vector<2x128xf32>
    %45 = tpu.matmul %44, %3, %cst_26 {dimension_numbers = #tpu.dot_dimension_numbers<[1], [0], [0], [1], [0, 0, 1, 1], [], []>} : vector<2x16xbf16>, vector<16x128xbf16>, vector<2x128xf32> -> vector<2x128xf32>
    %46 = vector.broadcast %5 : vector<1x128xf32> to vector<2x128xf32>
    %47 = arith.addf %45, %46 : vector<2x128xf32>
    %c0_27 = arith.constant 0 : index
    %c7 = arith.constant 7 : index
    %c0_28 = arith.constant 0 : index
    %48 = vector.load %arg1[%c0_27, %c7, %c0_28] : memref<2x8x16xf32, #tpu.memory_space<vmem>>, vector<2x1x16xf32>
    %49 = vector.shape_cast %48 : vector<2x1x16xf32> to vector<2x16xf32>
    %50 = arith.truncf %49 : vector<2x16xf32> to vector<2x16xbf16>
    %cst_29 = arith.constant dense<0.000000e+00> : vector<2x128xf32>
    %51 = tpu.matmul %50, %3, %cst_29 {dimension_numbers = #tpu.dot_dimension_numbers<[1], [0], [0], [1], [0, 0, 1, 1], [], []>} : vector<2x16xbf16>, vector<16x128xbf16>, vector<2x128xf32> -> vector<2x128xf32>
    %52 = vector.broadcast %5 : vector<1x128xf32> to vector<2x128xf32>
    %53 = arith.addf %51, %52 : vector<2x128xf32>
    %c0_30 = arith.constant 0 : index
    %c0_31 = arith.constant 0 : index
    %54 = vector.load %arg6[%c0_30, %c0_31] : memref<2x32xf32, #tpu.memory_space<vmem>>, vector<2x32xf32>
    %c0_32 = arith.constant 0 : index
    %c0_33 = arith.constant 0 : index
    %55 = vector.load %arg7[%c0_32, %c0_33] : memref<2x32xf32, #tpu.memory_space<vmem>>, vector<2x32xf32>
    %56 = arith.truncf %54 : vector<2x32xf32> to vector<2x32xbf16>
    %cst_34 = arith.constant dense<0.000000e+00> : vector<2x128xf32>
    %57 = tpu.matmul %56, %4, %cst_34 {dimension_numbers = #tpu.dot_dimension_numbers<[1], [0], [0], [1], [0, 0, 1, 1], [], []>} : vector<2x32xbf16>, vector<32x128xbf16>, vector<2x128xf32> -> vector<2x128xf32>
    %58 = arith.addf %11, %57 : vector<2x128xf32>
    %59 = vector.extract_strided_slice %58 {offsets = [0, 0], sizes = [2, 32], strides = [1, 1]} : vector<2x128xf32> to vector<2x32xf32>
    %cst_35 = arith.constant 5.000000e-01 : f32
    %60 = vector.broadcast %cst_35 : f32 to vector<2x32xf32>
    %61 = arith.mulf %60, %59 : vector<2x32xf32>
    %62 = math.tanh %61 : vector<2x32xf32>
    %cst_36 = arith.constant 5.000000e-01 : f32
    %63 = vector.broadcast %cst_36 : f32 to vector<2x32xf32>
    %64 = arith.mulf %63, %62 : vector<2x32xf32>
    %cst_37 = arith.constant 5.000000e-01 : f32
    %65 = vector.broadcast %cst_37 : f32 to vector<2x32xf32>
    %66 = arith.addf %64, %65 : vector<2x32xf32>
    %67 = vector.extract_strided_slice %58 {offsets = [0, 32], sizes = [2, 32], strides = [1, 1]} : vector<2x128xf32> to vector<2x32xf32>
    %cst_38 = arith.constant 5.000000e-01 : f32
    %68 = vector.broadcast %cst_38 : f32 to vector<2x32xf32>
    %69 = arith.mulf %68, %67 : vector<2x32xf32>
    %70 = math.tanh %69 : vector<2x32xf32>
    %cst_39 = arith.constant 5.000000e-01 : f32
    %71 = vector.broadcast %cst_39 : f32 to vector<2x32xf32>
    %72 = arith.mulf %71, %70 : vector<2x32xf32>
    %cst_40 = arith.constant 5.000000e-01 : f32
    %73 = vector.broadcast %cst_40 : f32 to vector<2x32xf32>
    %74 = arith.addf %72, %73 : vector<2x32xf32>
    %75 = vector.extract_strided_slice %58 {offsets = [0, 64], sizes = [2, 32], strides = [1, 1]} : vector<2x128xf32> to vector<2x32xf32>
    %76 = math.tanh %75 : vector<2x32xf32>
    %77 = vector.extract_strided_slice %58 {offsets = [0, 96], sizes = [2, 32], strides = [1, 1]} : vector<2x128xf32> to vector<2x32xf32>
    %cst_41 = arith.constant 5.000000e-01 : f32
    %78 = vector.broadcast %cst_41 : f32 to vector<2x32xf32>
    %79 = arith.mulf %78, %77 : vector<2x32xf32>
    %80 = math.tanh %79 : vector<2x32xf32>
    %cst_42 = arith.constant 5.000000e-01 : f32
    %81 = vector.broadcast %cst_42 : f32 to vector<2x32xf32>
    %82 = arith.mulf %81, %80 : vector<2x32xf32>
    %cst_43 = arith.constant 5.000000e-01 : f32
    %83 = vector.broadcast %cst_43 : f32 to vector<2x32xf32>
    %84 = arith.addf %82, %83 : vector<2x32xf32>
    %85 = arith.mulf %74, %55 : vector<2x32xf32>
    %86 = arith.mulf %66, %76 : vector<2x32xf32>
    %87 = arith.addf %85, %86 : vector<2x32xf32>
    %88 = math.tanh %87 : vector<2x32xf32>
    %89 = arith.mulf %84, %88 : vector<2x32xf32>
    %90 = arith.truncf %89 : vector<2x32xf32> to vector<2x32xbf16>
    %cst_44 = arith.constant dense<0.000000e+00> : vector<2x128xf32>
    %91 = tpu.matmul %90, %4, %cst_44 {dimension_numbers = #tpu.dot_dimension_numbers<[1], [0], [0], [1], [0, 0, 1, 1], [], []>} : vector<2x32xbf16>, vector<32x128xbf16>, vector<2x128xf32> -> vector<2x128xf32>
    %92 = arith.addf %17, %91 : vector<2x128xf32>
    %93 = vector.extract_strided_slice %92 {offsets = [0, 0], sizes = [2, 32], strides = [1, 1]} : vector<2x128xf32> to vector<2x32xf32>
    %cst_45 = arith.constant 5.000000e-01 : f32
    %94 = vector.broadcast %cst_45 : f32 to vector<2x32xf32>
    %95 = arith.mulf %94, %93 : vector<2x32xf32>
    %96 = math.tanh %95 : vector<2x32xf32>
    %cst_46 = arith.constant 5.000000e-01 : f32
    %97 = vector.broadcast %cst_46 : f32 to vector<2x32xf32>
    %98 = arith.mulf %97, %96 : vector<2x32xf32>
    %cst_47 = arith.constant 5.000000e-01 : f32
    %99 = vector.broadcast %cst_47 : f32 to vector<2x32xf32>
    %100 = arith.addf %98, %99 : vector<2x32xf32>
    %101 = vector.extract_strided_slice %92 {offsets = [0, 32], sizes = [2, 32], strides = [1, 1]} : vector<2x128xf32> to vector<2x32xf32>
    %cst_48 = arith.constant 5.000000e-01 : f32
    %102 = vector.broadcast %cst_48 : f32 to vector<2x32xf32>
    %103 = arith.mulf %102, %101 : vector<2x32xf32>
    %104 = math.tanh %103 : vector<2x32xf32>
    %cst_49 = arith.constant 5.000000e-01 : f32
    %105 = vector.broadcast %cst_49 : f32 to vector<2x32xf32>
    %106 = arith.mulf %105, %104 : vector<2x32xf32>
    %cst_50 = arith.constant 5.000000e-01 : f32
    %107 = vector.broadcast %cst_50 : f32 to vector<2x32xf32>
    %108 = arith.addf %106, %107 : vector<2x32xf32>
    %109 = vector.extract_strided_slice %92 {offsets = [0, 64], sizes = [2, 32], strides = [1, 1]} : vector<2x128xf32> to vector<2x32xf32>
    %110 = math.tanh %109 : vector<2x32xf32>
    %111 = vector.extract_strided_slice %92 {offsets = [0, 96], sizes = [2, 32], strides = [1, 1]} : vector<2x128xf32> to vector<2x32xf32>
    %cst_51 = arith.constant 5.000000e-01 : f32
    %112 = vector.broadcast %cst_51 : f32 to vector<2x32xf32>
    %113 = arith.mulf %112, %111 : vector<2x32xf32>
    %114 = math.tanh %113 : vector<2x32xf32>
    %cst_52 = arith.constant 5.000000e-01 : f32
    %115 = vector.broadcast %cst_52 : f32 to vector<2x32xf32>
    %116 = arith.mulf %115, %114 : vector<2x32xf32>
    %cst_53 = arith.constant 5.000000e-01 : f32
    %117 = vector.broadcast %cst_53 : f32 to vector<2x32xf32>
    %118 = arith.addf %116, %117 : vector<2x32xf32>
    %119 = arith.mulf %108, %87 : vector<2x32xf32>
    %120 = arith.mulf %100, %110 : vector<2x32xf32>
    %121 = arith.addf %119, %120 : vector<2x32xf32>
    %122 = math.tanh %121 : vector<2x32xf32>
    %123 = arith.mulf %118, %122 : vector<2x32xf32>
    %124 = arith.truncf %123 : vector<2x32xf32> to vector<2x32xbf16>
    %cst_54 = arith.constant dense<0.000000e+00> : vector<2x128xf32>
    %125 = tpu.matmul %124, %4, %cst_54 {dimension_numbers = #tpu.dot_dimension_numbers<[1], [0], [0], [1], [0, 0, 1, 1], [], []>} : vector<2x32xbf16>, vector<32x128xbf16>, vector<2x128xf32> -> vector<2x128xf32>
    %126 = arith.addf %23, %125 : vector<2x128xf32>
    %127 = vector.extract_strided_slice %126 {offsets = [0, 0], sizes = [2, 32], strides = [1, 1]} : vector<2x128xf32> to vector<2x32xf32>
    %cst_55 = arith.constant 5.000000e-01 : f32
    %128 = vector.broadcast %cst_55 : f32 to vector<2x32xf32>
    %129 = arith.mulf %128, %127 : vector<2x32xf32>
    %130 = math.tanh %129 : vector<2x32xf32>
    %cst_56 = arith.constant 5.000000e-01 : f32
    %131 = vector.broadcast %cst_56 : f32 to vector<2x32xf32>
    %132 = arith.mulf %131, %130 : vector<2x32xf32>
    %cst_57 = arith.constant 5.000000e-01 : f32
    %133 = vector.broadcast %cst_57 : f32 to vector<2x32xf32>
    %134 = arith.addf %132, %133 : vector<2x32xf32>
    %135 = vector.extract_strided_slice %126 {offsets = [0, 32], sizes = [2, 32], strides = [1, 1]} : vector<2x128xf32> to vector<2x32xf32>
    %cst_58 = arith.constant 5.000000e-01 : f32
    %136 = vector.broadcast %cst_58 : f32 to vector<2x32xf32>
    %137 = arith.mulf %136, %135 : vector<2x32xf32>
    %138 = math.tanh %137 : vector<2x32xf32>
    %cst_59 = arith.constant 5.000000e-01 : f32
    %139 = vector.broadcast %cst_59 : f32 to vector<2x32xf32>
    %140 = arith.mulf %139, %138 : vector<2x32xf32>
    %cst_60 = arith.constant 5.000000e-01 : f32
    %141 = vector.broadcast %cst_60 : f32 to vector<2x32xf32>
    %142 = arith.addf %140, %141 : vector<2x32xf32>
    %143 = vector.extract_strided_slice %126 {offsets = [0, 64], sizes = [2, 32], strides = [1, 1]} : vector<2x128xf32> to vector<2x32xf32>
    %144 = math.tanh %143 : vector<2x32xf32>
    %145 = vector.extract_strided_slice %126 {offsets = [0, 96], sizes = [2, 32], strides = [1, 1]} : vector<2x128xf32> to vector<2x32xf32>
    %cst_61 = arith.constant 5.000000e-01 : f32
    %146 = vector.broadcast %cst_61 : f32 to vector<2x32xf32>
    %147 = arith.mulf %146, %145 : vector<2x32xf32>
    %148 = math.tanh %147 : vector<2x32xf32>
    %cst_62 = arith.constant 5.000000e-01 : f32
    %149 = vector.broadcast %cst_62 : f32 to vector<2x32xf32>
    %150 = arith.mulf %149, %148 : vector<2x32xf32>
    %cst_63 = arith.constant 5.000000e-01 : f32
    %151 = vector.broadcast %cst_63 : f32 to vector<2x32xf32>
    %152 = arith.addf %150, %151 : vector<2x32xf32>
    %153 = arith.mulf %142, %121 : vector<2x32xf32>
    %154 = arith.mulf %134, %144 : vector<2x32xf32>
    %155 = arith.addf %153, %154 : vector<2x32xf32>
    %156 = math.tanh %155 : vector<2x32xf32>
    %157 = arith.mulf %152, %156 : vector<2x32xf32>
    %158 = arith.truncf %157 : vector<2x32xf32> to vector<2x32xbf16>
    %cst_64 = arith.constant dense<0.000000e+00> : vector<2x128xf32>
    %159 = tpu.matmul %158, %4, %cst_64 {dimension_numbers = #tpu.dot_dimension_numbers<[1], [0], [0], [1], [0, 0, 1, 1], [], []>} : vector<2x32xbf16>, vector<32x128xbf16>, vector<2x128xf32> -> vector<2x128xf32>
    %160 = arith.addf %29, %159 : vector<2x128xf32>
    %161 = vector.extract_strided_slice %160 {offsets = [0, 0], sizes = [2, 32], strides = [1, 1]} : vector<2x128xf32> to vector<2x32xf32>
    %cst_65 = arith.constant 5.000000e-01 : f32
    %162 = vector.broadcast %cst_65 : f32 to vector<2x32xf32>
    %163 = arith.mulf %162, %161 : vector<2x32xf32>
    %164 = math.tanh %163 : vector<2x32xf32>
    %cst_66 = arith.constant 5.000000e-01 : f32
    %165 = vector.broadcast %cst_66 : f32 to vector<2x32xf32>
    %166 = arith.mulf %165, %164 : vector<2x32xf32>
    %cst_67 = arith.constant 5.000000e-01 : f32
    %167 = vector.broadcast %cst_67 : f32 to vector<2x32xf32>
    %168 = arith.addf %166, %167 : vector<2x32xf32>
    %169 = vector.extract_strided_slice %160 {offsets = [0, 32], sizes = [2, 32], strides = [1, 1]} : vector<2x128xf32> to vector<2x32xf32>
    %cst_68 = arith.constant 5.000000e-01 : f32
    %170 = vector.broadcast %cst_68 : f32 to vector<2x32xf32>
    %171 = arith.mulf %170, %169 : vector<2x32xf32>
    %172 = math.tanh %171 : vector<2x32xf32>
    %cst_69 = arith.constant 5.000000e-01 : f32
    %173 = vector.broadcast %cst_69 : f32 to vector<2x32xf32>
    %174 = arith.mulf %173, %172 : vector<2x32xf32>
    %cst_70 = arith.constant 5.000000e-01 : f32
    %175 = vector.broadcast %cst_70 : f32 to vector<2x32xf32>
    %176 = arith.addf %174, %175 : vector<2x32xf32>
    %177 = vector.extract_strided_slice %160 {offsets = [0, 64], sizes = [2, 32], strides = [1, 1]} : vector<2x128xf32> to vector<2x32xf32>
    %178 = math.tanh %177 : vector<2x32xf32>
    %179 = vector.extract_strided_slice %160 {offsets = [0, 96], sizes = [2, 32], strides = [1, 1]} : vector<2x128xf32> to vector<2x32xf32>
    %cst_71 = arith.constant 5.000000e-01 : f32
    %180 = vector.broadcast %cst_71 : f32 to vector<2x32xf32>
    %181 = arith.mulf %180, %179 : vector<2x32xf32>
    %182 = math.tanh %181 : vector<2x32xf32>
    %cst_72 = arith.constant 5.000000e-01 : f32
    %183 = vector.broadcast %cst_72 : f32 to vector<2x32xf32>
    %184 = arith.mulf %183, %182 : vector<2x32xf32>
    %cst_73 = arith.constant 5.000000e-01 : f32
    %185 = vector.broadcast %cst_73 : f32 to vector<2x32xf32>
    %186 = arith.addf %184, %185 : vector<2x32xf32>
    %187 = arith.mulf %176, %155 : vector<2x32xf32>
    %188 = arith.mulf %168, %178 : vector<2x32xf32>
    %189 = arith.addf %187, %188 : vector<2x32xf32>
    %190 = math.tanh %189 : vector<2x32xf32>
    %191 = arith.mulf %186, %190 : vector<2x32xf32>
    %192 = arith.truncf %191 : vector<2x32xf32> to vector<2x32xbf16>
    %cst_74 = arith.constant dense<0.000000e+00> : vector<2x128xf32>
    %193 = tpu.matmul %192, %4, %cst_74 {dimension_numbers = #tpu.dot_dimension_numbers<[1], [0], [0], [1], [0, 0, 1, 1], [], []>} : vector<2x32xbf16>, vector<32x128xbf16>, vector<2x128xf32> -> vector<2x128xf32>
    %194 = arith.addf %35, %193 : vector<2x128xf32>
    %195 = vector.extract_strided_slice %194 {offsets = [0, 0], sizes = [2, 32], strides = [1, 1]} : vector<2x128xf32> to vector<2x32xf32>
    %cst_75 = arith.constant 5.000000e-01 : f32
    %196 = vector.broadcast %cst_75 : f32 to vector<2x32xf32>
    %197 = arith.mulf %196, %195 : vector<2x32xf32>
    %198 = math.tanh %197 : vector<2x32xf32>
    %cst_76 = arith.constant 5.000000e-01 : f32
    %199 = vector.broadcast %cst_76 : f32 to vector<2x32xf32>
    %200 = arith.mulf %199, %198 : vector<2x32xf32>
    %cst_77 = arith.constant 5.000000e-01 : f32
    %201 = vector.broadcast %cst_77 : f32 to vector<2x32xf32>
    %202 = arith.addf %200, %201 : vector<2x32xf32>
    %203 = vector.extract_strided_slice %194 {offsets = [0, 32], sizes = [2, 32], strides = [1, 1]} : vector<2x128xf32> to vector<2x32xf32>
    %cst_78 = arith.constant 5.000000e-01 : f32
    %204 = vector.broadcast %cst_78 : f32 to vector<2x32xf32>
    %205 = arith.mulf %204, %203 : vector<2x32xf32>
    %206 = math.tanh %205 : vector<2x32xf32>
    %cst_79 = arith.constant 5.000000e-01 : f32
    %207 = vector.broadcast %cst_79 : f32 to vector<2x32xf32>
    %208 = arith.mulf %207, %206 : vector<2x32xf32>
    %cst_80 = arith.constant 5.000000e-01 : f32
    %209 = vector.broadcast %cst_80 : f32 to vector<2x32xf32>
    %210 = arith.addf %208, %209 : vector<2x32xf32>
    %211 = vector.extract_strided_slice %194 {offsets = [0, 64], sizes = [2, 32], strides = [1, 1]} : vector<2x128xf32> to vector<2x32xf32>
    %212 = math.tanh %211 : vector<2x32xf32>
    %213 = vector.extract_strided_slice %194 {offsets = [0, 96], sizes = [2, 32], strides = [1, 1]} : vector<2x128xf32> to vector<2x32xf32>
    %cst_81 = arith.constant 5.000000e-01 : f32
    %214 = vector.broadcast %cst_81 : f32 to vector<2x32xf32>
    %215 = arith.mulf %214, %213 : vector<2x32xf32>
    %216 = math.tanh %215 : vector<2x32xf32>
    %cst_82 = arith.constant 5.000000e-01 : f32
    %217 = vector.broadcast %cst_82 : f32 to vector<2x32xf32>
    %218 = arith.mulf %217, %216 : vector<2x32xf32>
    %cst_83 = arith.constant 5.000000e-01 : f32
    %219 = vector.broadcast %cst_83 : f32 to vector<2x32xf32>
    %220 = arith.addf %218, %219 : vector<2x32xf32>
    %221 = arith.mulf %210, %189 : vector<2x32xf32>
    %222 = arith.mulf %202, %212 : vector<2x32xf32>
    %223 = arith.addf %221, %222 : vector<2x32xf32>
    %224 = math.tanh %223 : vector<2x32xf32>
    %225 = arith.mulf %220, %224 : vector<2x32xf32>
    %226 = arith.truncf %225 : vector<2x32xf32> to vector<2x32xbf16>
    %cst_84 = arith.constant dense<0.000000e+00> : vector<2x128xf32>
    %227 = tpu.matmul %226, %4, %cst_84 {dimension_numbers = #tpu.dot_dimension_numbers<[1], [0], [0], [1], [0, 0, 1, 1], [], []>} : vector<2x32xbf16>, vector<32x128xbf16>, vector<2x128xf32> -> vector<2x128xf32>
    %228 = arith.addf %41, %227 : vector<2x128xf32>
    %229 = vector.extract_strided_slice %228 {offsets = [0, 0], sizes = [2, 32], strides = [1, 1]} : vector<2x128xf32> to vector<2x32xf32>
    %cst_85 = arith.constant 5.000000e-01 : f32
    %230 = vector.broadcast %cst_85 : f32 to vector<2x32xf32>
    %231 = arith.mulf %230, %229 : vector<2x32xf32>
    %232 = math.tanh %231 : vector<2x32xf32>
    %cst_86 = arith.constant 5.000000e-01 : f32
    %233 = vector.broadcast %cst_86 : f32 to vector<2x32xf32>
    %234 = arith.mulf %233, %232 : vector<2x32xf32>
    %cst_87 = arith.constant 5.000000e-01 : f32
    %235 = vector.broadcast %cst_87 : f32 to vector<2x32xf32>
    %236 = arith.addf %234, %235 : vector<2x32xf32>
    %237 = vector.extract_strided_slice %228 {offsets = [0, 32], sizes = [2, 32], strides = [1, 1]} : vector<2x128xf32> to vector<2x32xf32>
    %cst_88 = arith.constant 5.000000e-01 : f32
    %238 = vector.broadcast %cst_88 : f32 to vector<2x32xf32>
    %239 = arith.mulf %238, %237 : vector<2x32xf32>
    %240 = math.tanh %239 : vector<2x32xf32>
    %cst_89 = arith.constant 5.000000e-01 : f32
    %241 = vector.broadcast %cst_89 : f32 to vector<2x32xf32>
    %242 = arith.mulf %241, %240 : vector<2x32xf32>
    %cst_90 = arith.constant 5.000000e-01 : f32
    %243 = vector.broadcast %cst_90 : f32 to vector<2x32xf32>
    %244 = arith.addf %242, %243 : vector<2x32xf32>
    %245 = vector.extract_strided_slice %228 {offsets = [0, 64], sizes = [2, 32], strides = [1, 1]} : vector<2x128xf32> to vector<2x32xf32>
    %246 = math.tanh %245 : vector<2x32xf32>
    %247 = vector.extract_strided_slice %228 {offsets = [0, 96], sizes = [2, 32], strides = [1, 1]} : vector<2x128xf32> to vector<2x32xf32>
    %cst_91 = arith.constant 5.000000e-01 : f32
    %248 = vector.broadcast %cst_91 : f32 to vector<2x32xf32>
    %249 = arith.mulf %248, %247 : vector<2x32xf32>
    %250 = math.tanh %249 : vector<2x32xf32>
    %cst_92 = arith.constant 5.000000e-01 : f32
    %251 = vector.broadcast %cst_92 : f32 to vector<2x32xf32>
    %252 = arith.mulf %251, %250 : vector<2x32xf32>
    %cst_93 = arith.constant 5.000000e-01 : f32
    %253 = vector.broadcast %cst_93 : f32 to vector<2x32xf32>
    %254 = arith.addf %252, %253 : vector<2x32xf32>
    %255 = arith.mulf %244, %223 : vector<2x32xf32>
    %256 = arith.mulf %236, %246 : vector<2x32xf32>
    %257 = arith.addf %255, %256 : vector<2x32xf32>
    %258 = math.tanh %257 : vector<2x32xf32>
    %259 = arith.mulf %254, %258 : vector<2x32xf32>
    %260 = arith.truncf %259 : vector<2x32xf32> to vector<2x32xbf16>
    %cst_94 = arith.constant dense<0.000000e+00> : vector<2x128xf32>
    %261 = tpu.matmul %260, %4, %cst_94 {dimension_numbers = #tpu.dot_dimension_numbers<[1], [0], [0], [1], [0, 0, 1, 1], [], []>} : vector<2x32xbf16>, vector<32x128xbf16>, vector<2x128xf32> -> vector<2x128xf32>
    %262 = arith.addf %47, %261 : vector<2x128xf32>
    %263 = vector.extract_strided_slice %262 {offsets = [0, 0], sizes = [2, 32], strides = [1, 1]} : vector<2x128xf32> to vector<2x32xf32>
    %cst_95 = arith.constant 5.000000e-01 : f32
    %264 = vector.broadcast %cst_95 : f32 to vector<2x32xf32>
    %265 = arith.mulf %264, %263 : vector<2x32xf32>
    %266 = math.tanh %265 : vector<2x32xf32>
    %cst_96 = arith.constant 5.000000e-01 : f32
    %267 = vector.broadcast %cst_96 : f32 to vector<2x32xf32>
    %268 = arith.mulf %267, %266 : vector<2x32xf32>
    %cst_97 = arith.constant 5.000000e-01 : f32
    %269 = vector.broadcast %cst_97 : f32 to vector<2x32xf32>
    %270 = arith.addf %268, %269 : vector<2x32xf32>
    %271 = vector.extract_strided_slice %262 {offsets = [0, 32], sizes = [2, 32], strides = [1, 1]} : vector<2x128xf32> to vector<2x32xf32>
    %cst_98 = arith.constant 5.000000e-01 : f32
    %272 = vector.broadcast %cst_98 : f32 to vector<2x32xf32>
    %273 = arith.mulf %272, %271 : vector<2x32xf32>
    %274 = math.tanh %273 : vector<2x32xf32>
    %cst_99 = arith.constant 5.000000e-01 : f32
    %275 = vector.broadcast %cst_99 : f32 to vector<2x32xf32>
    %276 = arith.mulf %275, %274 : vector<2x32xf32>
    %cst_100 = arith.constant 5.000000e-01 : f32
    %277 = vector.broadcast %cst_100 : f32 to vector<2x32xf32>
    %278 = arith.addf %276, %277 : vector<2x32xf32>
    %279 = vector.extract_strided_slice %262 {offsets = [0, 64], sizes = [2, 32], strides = [1, 1]} : vector<2x128xf32> to vector<2x32xf32>
    %280 = math.tanh %279 : vector<2x32xf32>
    %281 = vector.extract_strided_slice %262 {offsets = [0, 96], sizes = [2, 32], strides = [1, 1]} : vector<2x128xf32> to vector<2x32xf32>
    %cst_101 = arith.constant 5.000000e-01 : f32
    %282 = vector.broadcast %cst_101 : f32 to vector<2x32xf32>
    %283 = arith.mulf %282, %281 : vector<2x32xf32>
    %284 = math.tanh %283 : vector<2x32xf32>
    %cst_102 = arith.constant 5.000000e-01 : f32
    %285 = vector.broadcast %cst_102 : f32 to vector<2x32xf32>
    %286 = arith.mulf %285, %284 : vector<2x32xf32>
    %cst_103 = arith.constant 5.000000e-01 : f32
    %287 = vector.broadcast %cst_103 : f32 to vector<2x32xf32>
    %288 = arith.addf %286, %287 : vector<2x32xf32>
    %289 = arith.mulf %278, %257 : vector<2x32xf32>
    %290 = arith.mulf %270, %280 : vector<2x32xf32>
    %291 = arith.addf %289, %290 : vector<2x32xf32>
    %292 = math.tanh %291 : vector<2x32xf32>
    %293 = arith.mulf %288, %292 : vector<2x32xf32>
    %294 = arith.truncf %293 : vector<2x32xf32> to vector<2x32xbf16>
    %cst_104 = arith.constant dense<0.000000e+00> : vector<2x128xf32>
    %295 = tpu.matmul %294, %4, %cst_104 {dimension_numbers = #tpu.dot_dimension_numbers<[1], [0], [0], [1], [0, 0, 1, 1], [], []>} : vector<2x32xbf16>, vector<32x128xbf16>, vector<2x128xf32> -> vector<2x128xf32>
    %296 = arith.addf %53, %295 : vector<2x128xf32>
    %297 = vector.extract_strided_slice %296 {offsets = [0, 0], sizes = [2, 32], strides = [1, 1]} : vector<2x128xf32> to vector<2x32xf32>
    %cst_105 = arith.constant 5.000000e-01 : f32
    %298 = vector.broadcast %cst_105 : f32 to vector<2x32xf32>
    %299 = arith.mulf %298, %297 : vector<2x32xf32>
    %300 = math.tanh %299 : vector<2x32xf32>
    %cst_106 = arith.constant 5.000000e-01 : f32
    %301 = vector.broadcast %cst_106 : f32 to vector<2x32xf32>
    %302 = arith.mulf %301, %300 : vector<2x32xf32>
    %cst_107 = arith.constant 5.000000e-01 : f32
    %303 = vector.broadcast %cst_107 : f32 to vector<2x32xf32>
    %304 = arith.addf %302, %303 : vector<2x32xf32>
    %305 = vector.extract_strided_slice %296 {offsets = [0, 32], sizes = [2, 32], strides = [1, 1]} : vector<2x128xf32> to vector<2x32xf32>
    %cst_108 = arith.constant 5.000000e-01 : f32
    %306 = vector.broadcast %cst_108 : f32 to vector<2x32xf32>
    %307 = arith.mulf %306, %305 : vector<2x32xf32>
    %308 = math.tanh %307 : vector<2x32xf32>
    %cst_109 = arith.constant 5.000000e-01 : f32
    %309 = vector.broadcast %cst_109 : f32 to vector<2x32xf32>
    %310 = arith.mulf %309, %308 : vector<2x32xf32>
    %cst_110 = arith.constant 5.000000e-01 : f32
    %311 = vector.broadcast %cst_110 : f32 to vector<2x32xf32>
    %312 = arith.addf %310, %311 : vector<2x32xf32>
    %313 = vector.extract_strided_slice %296 {offsets = [0, 64], sizes = [2, 32], strides = [1, 1]} : vector<2x128xf32> to vector<2x32xf32>
    %314 = math.tanh %313 : vector<2x32xf32>
    %315 = vector.extract_strided_slice %296 {offsets = [0, 96], sizes = [2, 32], strides = [1, 1]} : vector<2x128xf32> to vector<2x32xf32>
    %cst_111 = arith.constant 5.000000e-01 : f32
    %316 = vector.broadcast %cst_111 : f32 to vector<2x32xf32>
    %317 = arith.mulf %316, %315 : vector<2x32xf32>
    %318 = math.tanh %317 : vector<2x32xf32>
    %cst_112 = arith.constant 5.000000e-01 : f32
    %319 = vector.broadcast %cst_112 : f32 to vector<2x32xf32>
    %320 = arith.mulf %319, %318 : vector<2x32xf32>
    %cst_113 = arith.constant 5.000000e-01 : f32
    %321 = vector.broadcast %cst_113 : f32 to vector<2x32xf32>
    %322 = arith.addf %320, %321 : vector<2x32xf32>
    %323 = arith.mulf %312, %291 : vector<2x32xf32>
    %324 = arith.mulf %304, %314 : vector<2x32xf32>
    %325 = arith.addf %323, %324 : vector<2x32xf32>
    %326 = math.tanh %325 : vector<2x32xf32>
    %327 = arith.mulf %322, %326 : vector<2x32xf32>
    %c0_114 = arith.constant 0 : index
    %c0_115 = arith.constant 0 : index
    %328 = vector.load %arg6[%c0_114, %c0_115] : memref<2x32xf32, #tpu.memory_space<vmem>>, vector<2x32xf32>
    tpu.vector_store %arg6[%c0_114, %c0_115], %327 {strides = array<i32>} : memref<2x32xf32, #tpu.memory_space<vmem>>, vector<2x32xf32>,
    %c0_116 = arith.constant 0 : index
    %c0_117 = arith.constant 0 : index
    %329 = vector.load %arg7[%c0_116, %c0_117] : memref<2x32xf32, #tpu.memory_space<vmem>>, vector<2x32xf32>
    tpu.vector_store %arg7[%c0_116, %c0_117], %325 {strides = array<i32>} : memref<2x32xf32, #tpu.memory_space<vmem>>, vector<2x32xf32>,
    %c0_i32_118 = arith.constant 0 : i32
    %330 = arith.cmpi eq, %arg0, %c0_i32_118 : i32
    %331 = arith.extui %330 : i1 to i32
    %c0_i32_119 = arith.constant 0 : i32
    %332 = arith.cmpi ne, %331, %c0_i32_119 : i32
    scf.if %332 {
      %c0_120 = arith.constant 0 : index
      %c0_121 = arith.constant 0 : index
      %333 = vector.load %arg5[%c0_120, %c0_121] : memref<2x32xf32, #tpu.memory_space<vmem>>, vector<2x32xf32>
      tpu.vector_store %arg5[%c0_120, %c0_121], %327 {strides = array<i32>} : memref<2x32xf32, #tpu.memory_space<vmem>>, vector<2x32xf32>,
    } else {
    }
    return
  }
  func.func @transform_0(%arg0: i32) -> (i32, i32, i32) {
    %c0_i32 = arith.constant 0 : i32
    %c0_i32_0 = arith.constant 0 : i32
    %c0_i32_1 = arith.constant 0 : i32
    return %c0_i32, %arg0, %c0_i32_0 : i32, i32, i32
  }
  func.func @transform_1(%arg0: i32) -> (i32, i32) {
    %c0_i32 = arith.constant 0 : i32
    %c0_i32_0 = arith.constant 0 : i32
    %c0_i32_1 = arith.constant 0 : i32
    return %c0_i32, %c0_i32_0 : i32, i32
  }
  func.func @transform_2(%arg0: i32) -> (i32, i32) {
    %c0_i32 = arith.constant 0 : i32
    %c0_i32_0 = arith.constant 0 : i32
    %c0_i32_1 = arith.constant 0 : i32
    return %c0_i32, %c0_i32_0 : i32, i32
  }
  func.func @transform_3(%arg0: i32) -> (i32, i32) {
    %c0_i32 = arith.constant 0 : i32
    %c0_i32_0 = arith.constant 0 : i32
    %c0_i32_1 = arith.constant 0 : i32
    return %c0_i32, %c0_i32_0 : i32, i32
  }
  func.func @transform_4(%arg0: i32) -> (i32, i32) {
    %c0_i32 = arith.constant 0 : i32
    %c0_i32_0 = arith.constant 0 : i32
    %c0_i32_1 = arith.constant 0 : i32
    return %c0_i32, %c0_i32_0 : i32, i32
  }
}

</mosaic_0001>

<llo_original>
// kernel: tpu_custom_call.1
$region0: #{tpu_custom_call.1}
  #allocation0 [shape = 'u32[]', space=smem, size = 0x4, offset = 0x4, fixed_abs, tag = 'smem constant byte address 0x4 - core index']
  #allocation1 [shape = 'u32[72,128]{1,0:T(1,128)}', space=vmem, size = 0x9000, scoped, tag = 'internal scratch']
  #allocation2 [shape = 'f32[2,32]{1,0:T(2,128)}', space=vmem, size = 0x400, scoped, tag = 'scratch operand']
  #allocation3 [shape = 'f32[2,32]{1,0:T(2,128)}', space=vmem, size = 0x400, scoped, tag = 'scratch operand']
  %s0 = inlined_call_operand.hbm [shape: f32[2,8,16], index: 0, kind: input, shape index: {}]
  %s1 = inlined_call_operand.hbm [shape: bf16[16,128], index: 1, kind: input, shape index: {}]
  %s2 = inlined_call_operand.hbm [shape: bf16[32,128], index: 2, kind: input, shape index: {}]
  %s3 = inlined_call_operand.vmem [shape: f32[1,128], index: 3, kind: input, shape index: {}]
  %s4 = inlined_call_operand.hbm [shape: f32[2,32], index: 4, kind: output, shape index: {}]
  %s5 = sld [smem:[#allocation0]]
  $region46: #{tpu_custom_call.1} parent=0
    _
  %s7 = ssub.s32 1, %s5
  %s8 = scalar_select 0, %s7, %s5
  $region1: #{tpu_custom_call.1} parent=0
    #allocation4 [shape = 'u8[8192]{0}', space=vmem, size = 0x2000, scoped, tag = 'input window, operand 0, single buffered']
    #allocation5 [shape = 's32[1]{0}', space=sflag, size = 0x4, scoped, tag = 'scoped memory for tpu_custom_call.1']
    #allocation6 [shape = 's32[1]{0}', space=sflag, size = 0x4, scoped, tag = 'scoped memory for tpu_custom_call.1']
    #allocation7 [shape = 'u8[4096]{0}', space=vmem, size = 0x1000, scoped, tag = 'input window, operand 1, single buffered']
    #allocation8 [shape = 's32[1]{0}', space=sflag, size = 0x4, scoped, tag = 'scoped memory for tpu_custom_call.1']
    #allocation9 [shape = 'u8[8192]{0}', space=vmem, size = 0x2000, scoped, tag = 'input window, operand 2, single buffered']
    #allocation10 [shape = 'u8[1024]{0}', space=vmem, size = 0x400, scoped, tag = 'output window, operand 0, single buffered']
    %9 = vsyncpa [#allocation5], 0
    %10 = vsyncpa [#allocation8], 0
    %11 = vsyncpa [#allocation6], 0
    // Predicated region
    $region2: #{tpu_custom_call.1} parent=1 // pred_check
      _
    $region3: #{tpu_custom_call.1} parent=1 // pred_check_branch
      %13 = sbr.rel (0) target = $region5
    $region4: #{tpu_custom_call.1} parent=1 // pred_region
      %15 = vsyncadd [#allocation5], 0
      %s16 = sshll.u32 %s0, 4
      %s17 = int_to_ptr.hbm [resolvable:$true] %s16
      %s18 = sshll.u32 [#allocation4], 4
      %s19 = int_to_ptr.vmem [resolvable:$true] %s18
      %24 = dma.hbm_to_vmem [thread:$0]  %s17, 256, %s19, [#allocation5], 128, 128, 8
    $region5: #{tpu_custom_call.1} parent=1 // pred_fallthru
      _
    // Predicated region
    $region6: #{tpu_custom_call.1} parent=1 // pred_check
      _
    $region7: #{tpu_custom_call.1} parent=1 // pred_check_branch
      %26 = sbr.rel (0) target = $region9
    $region8: #{tpu_custom_call.1} parent=1 // pred_region
      %28 = vsyncadd [#allocation8], 0
      %s29 = sshll.u32 %s1, 4
      %s30 = int_to_ptr.hbm [resolvable:$true] %s29
      %s31 = sshll.u32 [#allocation7], 4
      %s32 = int_to_ptr.vmem [resolvable:$true] %s31
      %37 = dma.hbm_to_vmem [thread:$0]  %s30, 128, %s32, [#allocation8], 64, 64, 4
    $region9: #{tpu_custom_call.1} parent=1 // pred_fallthru
      _
    // Predicated region
    $region10: #{tpu_custom_call.1} parent=1 // pred_check
      _
    $region11: #{tpu_custom_call.1} parent=1 // pred_check_branch
      %39 = sbr.rel (0) target = $region13
    $region12: #{tpu_custom_call.1} parent=1 // pred_region
      %41 = vsyncadd [#allocation8], 0
      %s42 = sshll.u32 %s2, 4
      %s43 = int_to_ptr.hbm [resolvable:$true] %s42
      %s44 = sshll.u32 [#allocation9], 4
      %s45 = int_to_ptr.vmem [resolvable:$true] %s44
      %50 = dma.hbm_to_vmem [thread:$0]  %s43, 256, %s45, [#allocation8], 64, 64, 4
    $region13: #{tpu_custom_call.1} parent=1 // pred_fallthru
      _
    // Predicated region
    $region14: #{tpu_custom_call.1} parent=1 // pred_check
      _
    $region15: #{tpu_custom_call.1} parent=1 // pred_check_branch
      %52 = sbr.rel (0) target = $region17
    $region16: #{tpu_custom_call.1} parent=1 // pred_region
      _
    $region17: #{tpu_custom_call.1} parent=1 // pred_fallthru
      _
    // Predicated region
    $region18: #{tpu_custom_call.1} parent=1 // pred_check
      _
    $region19: #{tpu_custom_call.1} parent=1 // pred_check_branch
      %54 = sbr.rel (0) target = $region21
    $region20: #{tpu_custom_call.1} parent=1 // pred_region
      %56 = dma.done [#allocation5], 256
    $region21: #{tpu_custom_call.1} parent=1 // pred_fallthru
      _
    // Predicated region
    $region22: #{tpu_custom_call.1} parent=1 // pred_check
      _
    $region23: #{tpu_custom_call.1} parent=1 // pred_check_branch
      %58 = sbr.rel (0) target = $region25
    $region24: #{tpu_custom_call.1} parent=1 // pred_region
      %60 = dma.done [#allocation8], 128
    $region25: #{tpu_custom_call.1} parent=1 // pred_fallthru
      _
    // Predicated region
    $region26: #{tpu_custom_call.1} parent=1 // pred_check
      _
    $region27: #{tpu_custom_call.1} parent=1 // pred_check_branch
      %62 = sbr.rel (0) target = $region29
    $region28: #{tpu_custom_call.1} parent=1 // pred_region
      %64 = dma.done [#allocation8], 256
    $region29: #{tpu_custom_call.1} parent=1 // pred_fallthru
      _
    %p66 = scmp.eq.s32.totalorder 0, 0
    // Predicated region
    $region30: #{tpu_custom_call.1} parent=1 // pred_check
      %p67 = pneg %p66
    $region31: #{tpu_custom_call.1} parent=1 // pred_check_branch
      %69 = sbr.rel (%p67) target = $region33
    $region32: #{tpu_custom_call.1} parent=1 // pred_region
      %vm70 = vcmask 254976
      %71 = vst.msk [vmem:[#allocation2] sm:$0x3] %vm70, 0.0
      %72 = vst.msk [vmem:[#allocation3] sm:$0x3] %vm70, 0.0
    $region33: #{tpu_custom_call.1} parent=1 // pred_fallthru
      _
    %v73 = vld [vmem:[#allocation7] sm:$0xf]
    %v74 = vld [vmem:[#allocation7 + $0x4] sm:$0xf]
    %v75 = vld [vmem:[#allocation9] sm:$0xf]
    %v76 = vld [vmem:[#allocation9 + $0x4] sm:$0xf]
    %v77 = vld [vmem:[#allocation9 + $0x8] sm:$0xf]
    %v78 = vld [vmem:[#allocation9 + $0xc] sm:$0xf]
    %v79 = vld [vmem:[%s3] sm:$0x1]
    %v80 = vld [vmem:[#allocation4] sm:$0x1]
    %v81 = vld [vmem:[#allocation4 + $0x8] sm:$0x1]
    %v82 = vpack.c.bf16 %v80, %v80
    %v83 = vpack.c.bf16 %v81, %v81
    %v85 = vperm.slane %v79, 0
    %v89 = vunpack.c.l.b16 %v82
    %v90 = vunpack.c.l.b16 %v83
    %v91 = vrot.slane %v90, 7
    %vm92 = vcmask 1041409
    %v93 = vsel %vm92, %v91, %v89
    %v94 = vpack.c.b16 %v93, %v93
    %v97 = vunpack.c.l.b16 %v73
    %v98 = vunpack.c.l.b16 %v74
    %v99 = vpack.c.b16 %v98, %v97
    %vm101 = vcmask 130048
    %v103 = vsel %vm101, %v94, 0
    %105 = vmatpush.bf16.msra.mxu0 0
    %106 = vmatpush.bf16.msra.mxu0 0
    %107 = vmatpush.bf16.msra.mxu0 0
    %108 = vmatpush.bf16.msra.mxu0 0
    %109 = vmatpush.bf16.msra.mxu0 0
    %110 = vmatpush.bf16.msra.mxu0 0
    %111 = vmatpush.bf16.msra.mxu0 0
    %112 = vmatpush.bf16.msra.mxu0 %v99
    %113 = vmatmul.bf16.gmra.mxu0 %v103
    %v114 = vpop.f32.mrf.mxu0
    %v115 = vadd.f32 %v85, %v114
    %v116 = vpop.f32.mrf.mxu0
    %117 = vdwg.mxu0
    %v118 = vld [vmem:[#allocation4 + $0x1] sm:$0x1]
    %v119 = vld [vmem:[#allocation4 + $0x9] sm:$0x1]
    %v120 = vpack.c.bf16 %v118, %v118
    %v121 = vpack.c.bf16 %v119, %v119
    %v124 = vunpack.c.l.b16 %v120
    %v125 = vunpack.c.l.b16 %v121
    %v126 = vrot.slane %v125, 7
    %v127 = vsel %vm92, %v126, %v124
    %v128 = vpack.c.b16 %v127, %v127
    %v130 = vsel %vm101, %v128, 0
    %132 = vmatpush.bf16.msra.mxu0 0
    %133 = vmatpush.bf16.msra.mxu0 0
    %134 = vmatpush.bf16.msra.mxu0 0
    %135 = vmatpush.bf16.msra.mxu0 0
    %136 = vmatpush.bf16.msra.mxu0 0
    %137 = vmatpush.bf16.msra.mxu0 0
    %138 = vmatpush.bf16.msra.mxu0 0
    %139 = vmatpush.bf16.msra.mxu0 %v99
    %140 = vmatmul.bf16.gmra.mxu0 %v130
    %v141 = vpop.f32.mrf.mxu0
    %v142 = vadd.f32 %v85, %v141
    %v143 = vpop.f32.mrf.mxu0
    %144 = vdwg.mxu0
    %v145 = vld [vmem:[#allocation4 + $0x2] sm:$0x1]
    %v146 = vld [vmem:[#allocation4 + $0xa] sm:$0x1]
    %v147 = vpack.c.bf16 %v145, %v145
    %v148 = vpack.c.bf16 %v146, %v146
    %v151 = vunpack.c.l.b16 %v147
    %v152 = vunpack.c.l.b16 %v148
    %v153 = vrot.slane %v152, 7
    %v154 = vsel %vm92, %v153, %v151
    %v155 = vpack.c.b16 %v154, %v154
    %v157 = vsel %vm101, %v155, 0
    %159 = vmatpush.bf16.msra.mxu0 0
    %160 = vmatpush.bf16.msra.mxu0 0
    %161 = vmatpush.bf16.msra.mxu0 0
    %162 = vmatpush.bf16.msra.mxu0 0
    %163 = vmatpush.bf16.msra.mxu0 0
    %164 = vmatpush.bf16.msra.mxu0 0
    %165 = vmatpush.bf16.msra.mxu0 0
    %166 = vmatpush.bf16.msra.mxu0 %v99
    %167 = vmatmul.bf16.gmra.mxu0 %v157
    %v168 = vpop.f32.mrf.mxu0
    %v169 = vadd.f32 %v85, %v168
    %v170 = vpop.f32.mrf.mxu0
    %171 = vdwg.mxu0
    %v172 = vld [vmem:[#allocation4 + $0x3] sm:$0x1]
    %v173 = vld [vmem:[#allocation4 + $0xb] sm:$0x1]
    %v174 = vpack.c.bf16 %v172, %v172
    %v175 = vpack.c.bf16 %v173, %v173
    %v178 = vunpack.c.l.b16 %v174
    %v179 = vunpack.c.l.b16 %v175
    %v180 = vrot.slane %v179, 7
    %v181 = vsel %vm92, %v180, %v178
    %v182 = vpack.c.b16 %v181, %v181
    %v184 = vsel %vm101, %v182, 0
    %186 = vmatpush.bf16.msra.mxu0 0
    %187 = vmatpush.bf16.msra.mxu0 0
    %188 = vmatpush.bf16.msra.mxu0 0
    %189 = vmatpush.bf16.msra.mxu0 0
    %190 = vmatpush.bf16.msra.mxu0 0
    %191 = vmatpush.bf16.msra.mxu0 0
    %192 = vmatpush.bf16.msra.mxu0 0
    %193 = vmatpush.bf16.msra.mxu0 %v99
    %194 = vmatmul.bf16.gmra.mxu0 %v184
    %v195 = vpop.f32.mrf.mxu0
    %v196 = vadd.f32 %v85, %v195
    %v197 = vpop.f32.mrf.mxu0
    %198 = vdwg.mxu0
    %v199 = vld [vmem:[#allocation4 + $0x4] sm:$0x1]
    %v200 = vld [vmem:[#allocation4 + $0xc] sm:$0x1]
    %v201 = vpack.c.bf16 %v199, %v199
    %v202 = vpack.c.bf16 %v200, %v200
    %v205 = vunpack.c.l.b16 %v201
    %v206 = vunpack.c.l.b16 %v202
    %v207 = vrot.slane %v206, 7
    %v208 = vsel %vm92, %v207, %v205
    %v209 = vpack.c.b16 %v208, %v208
    %v211 = vsel %vm101, %v209, 0
    %213 = vmatpush.bf16.msra.mxu0 0
    %214 = vmatpush.bf16.msra.mxu0 0
    %215 = vmatpush.bf16.msra.mxu0 0
    %216 = vmatpush.bf16.msra.mxu0 0
    %217 = vmatpush.bf16.msra.mxu0 0
    %218 = vmatpush.bf16.msra.mxu0 0
    %219 = vmatpush.bf16.msra.mxu0 0
    %220 = vmatpush.bf16.msra.mxu0 %v99
    %221 = vmatmul.bf16.gmra.mxu0 %v211
    %v222 = vpop.f32.mrf.mxu0
    %v223 = vadd.f32 %v85, %v222
    %v224 = vpop.f32.mrf.mxu0
    %225 = vdwg.mxu0
    %v226 = vld [vmem:[#allocation4 + $0x5] sm:$0x1]
    %v227 = vld [vmem:[#allocation4 + $0xd] sm:$0x1]
    %v228 = vpack.c.bf16 %v226, %v226
    %v229 = vpack.c.bf16 %v227, %v227
    %v232 = vunpack.c.l.b16 %v228
    %v233 = vunpack.c.l.b16 %v229
    %v234 = vrot.slane %v233, 7
    %v235 = vsel %vm92, %v234, %v232
    %v236 = vpack.c.b16 %v235, %v235
    %v238 = vsel %vm101, %v236, 0
    %240 = vmatpush.bf16.msra.mxu0 0
    %241 = vmatpush.bf16.msra.mxu0 0
    %242 = vmatpush.bf16.msra.mxu0 0
    %243 = vmatpush.bf16.msra.mxu0 0
    %244 = vmatpush.bf16.msra.mxu0 0
    %245 = vmatpush.bf16.msra.mxu0 0
    %246 = vmatpush.bf16.msra.mxu0 0
    %247 = vmatpush.bf16.msra.mxu0 %v99
    %248 = vmatmul.bf16.gmra.mxu0 %v238
    %v249 = vpop.f32.mrf.mxu0
    %v250 = vadd.f32 %v85, %v249
    %v251 = vpop.f32.mrf.mxu0
    %252 = vdwg.mxu0
    %v253 = vld [vmem:[#allocation4 + $0x6] sm:$0x1]
    %v254 = vld [vmem:[#allocation4 + $0xe] sm:$0x1]
    %v255 = vpack.c.bf16 %v253, %v253
    %v256 = vpack.c.bf16 %v254, %v254
    %v259 = vunpack.c.l.b16 %v255
    %v260 = vunpack.c.l.b16 %v256
    %v261 = vrot.slane %v260, 7
    %v262 = vsel %vm92, %v261, %v259
    %v263 = vpack.c.b16 %v262, %v262
    %v265 = vsel %vm101, %v263, 0
    %267 = vmatpush.bf16.msra.mxu0 0
    %268 = vmatpush.bf16.msra.mxu0 0
    %269 = vmatpush.bf16.msra.mxu0 0
    %270 = vmatpush.bf16.msra.mxu0 0
    %271 = vmatpush.bf16.msra.mxu0 0
    %272 = vmatpush.bf16.msra.mxu0 0
    %273 = vmatpush.bf16.msra.mxu0 0
    %274 = vmatpush.bf16.msra.mxu0 %v99
    %275 = vmatmul.bf16.gmra.mxu0 %v265
    %v276 = vpop.f32.mrf.mxu0
    %v277 = vadd.f32 %v85, %v276
    %v278 = vpop.f32.mrf.mxu0
    %279 = vdwg.mxu0
    %v280 = vld [vmem:[#allocation4 + $0x7] sm:$0x1]
    %v281 = vld [vmem:[#allocation4 + $0xf] sm:$0x1]
    %v282 = vpack.c.bf16 %v280, %v280
    %v283 = vpack.c.bf16 %v281, %v281
    %v286 = vunpack.c.l.b16 %v282
    %v287 = vunpack.c.l.b16 %v283
    %v288 = vrot.slane %v287, 7
    %v289 = vsel %vm92, %v288, %v286
    %v290 = vpack.c.b16 %v289, %v289
    %v292 = vsel %vm101, %v290, 0
    %294 = vmatpush.bf16.msra.mxu0 0
    %295 = vmatpush.bf16.msra.mxu0 0
    %296 = vmatpush.bf16.msra.mxu0 0
    %297 = vmatpush.bf16.msra.mxu0 0
    %298 = vmatpush.bf16.msra.mxu0 0
    %299 = vmatpush.bf16.msra.mxu0 0
    %300 = vmatpush.bf16.msra.mxu0 0
    %301 = vmatpush.bf16.msra.mxu0 %v99
    %302 = vmatmul.bf16.gmra.mxu0 %v292
    %v303 = vpop.f32.mrf.mxu0
    %v304 = vadd.f32 %v85, %v303
    %v305 = vpop.f32.mrf.mxu0
    %306 = vdwg.mxu0
    %v307 = vld [vmem:[#allocation2] sm:$0x3]
    %v308 = vld [vmem:[#allocation3] sm:$0x3]
    %v309 = vpack.c.bf16 %v307, %v307
    %v314 = vunpack.c.l.b16 %v75
    %v315 = vunpack.c.l.b16 %v76
    %v316 = vunpack.c.l.b16 %v77
    %v317 = vunpack.c.l.b16 %v78
    %v318 = vpack.c.b16 %v315, %v314
    %v319 = vpack.c.b16 %v317, %v316
    %vm322 = vcmask 261120
    %v324 = vsel %vm322, %v309, 0
    %326 = vmatpush.bf16.msra.mxu0 0
    %327 = vmatpush.bf16.msra.mxu0 0
    %328 = vmatpush.bf16.msra.mxu0 0
    %329 = vmatpush.bf16.msra.mxu0 0
    %330 = vmatpush.bf16.msra.mxu0 0
    %331 = vmatpush.bf16.msra.mxu0 0
    %332 = vmatpush.bf16.msra.mxu0 %v319
    %333 = vmatpush.bf16.msra.mxu0 %v318
    %334 = vmatmul.bf16.gmra.mxu0 %v324
    %v335 = vpop.f32.mrf.mxu0
    %v336 = vadd.f32 0.0, %v335
    %v337 = vpop.f32.mrf.mxu0
    %338 = vdwg.mxu0
    %v339 = vadd.f32 %v115, %v336
    %v340 = vmul.f32 %v339, 0.5
    %v341 = vtanh.pop %v340
    %v342 = vmul.f32 %v341, 0.5
    %v343 = vadd.f32 %v342, 0.5
    %v344 = vtanh.pop %v339
    %346 = vrot.lane.b32.xlu0 %v308, 32
    %v347 = vpop.permute.xlu0 %346
    %v349 = vmul.f32 %v343, %v347
    %351 = vrot.lane.b32.xlu0 %v344, 64
    %v352 = vpop.permute.xlu0 %351
    %v354 = vmul.f32 %v343, %v352
    %356 = vrot.lane.b32.xlu0 %v354, 32
    %v357 = vpop.permute.xlu0 %356
    %v359 = vadd.f32 %v349, %v357
    %v360 = vtanh.pop %v359
    %362 = vrot.lane.b32.xlu0 %v360, 64
    %v363 = vpop.permute.xlu0 %362
    %v365 = vmul.f32 %v343, %v363
    %v366 = vpack.c.bf16 %v365, %v365
    %368 = vrot.lane.b32.xlu0 %v366, 32
    %v369 = vpop.permute.xlu0 %368
    %v371 = vsel %vm322, %v369, 0
    %373 = vmatpush.bf16.msra.mxu0 0
    %374 = vmatpush.bf16.msra.mxu0 0
    %375 = vmatpush.bf16.msra.mxu0 0
    %376 = vmatpush.bf16.msra.mxu0 0
    %377 = vmatpush.bf16.msra.mxu0 0
    %378 = vmatpush.bf16.msra.mxu0 0
    %379 = vmatpush.bf16.msra.mxu0 %v319
    %380 = vmatpush.bf16.msra.mxu0 %v318
    %381 = vmatmul.bf16.gmra.mxu0 %v371
    %v382 = vpop.f32.mrf.mxu0
    %v383 = vadd.f32 0.0, %v382
    %v384 = vpop.f32.mrf.mxu0
    %385 = vdwg.mxu0
    %v386 = vadd.f32 %v142, %v383
    %v387 = vmul.f32 %v386, 0.5
    %v388 = vtanh.pop %v387
    %v389 = vmul.f32 %v388, 0.5
    %v390 = vadd.f32 %v389, 0.5
    %v391 = vtanh.pop %v386
    %v392 = vmul.f32 %v390, %v359
    %394 = vrot.lane.b32.xlu0 %v391, 64
    %v395 = vpop.permute.xlu0 %394
    %v397 = vmul.f32 %v390, %v395
    %399 = vrot.lane.b32.xlu0 %v397, 32
    %v400 = vpop.permute.xlu0 %399
    %v402 = vadd.f32 %v392, %v400
    %v403 = vtanh.pop %v402
    %405 = vrot.lane.b32.xlu0 %v403, 64
    %v406 = vpop.permute.xlu0 %405
    %v408 = vmul.f32 %v390, %v406
    %v409 = vpack.c.bf16 %v408, %v408
    %411 = vrot.lane.b32.xlu0 %v409, 32
    %v412 = vpop.permute.xlu0 %411
    %v414 = vsel %vm322, %v412, 0
    %416 = vmatpush.bf16.msra.mxu0 0
    %417 = vmatpush.bf16.msra.mxu0 0
    %418 = vmatpush.bf16.msra.mxu0 0
    %419 = vmatpush.bf16.msra.mxu0 0
    %420 = vmatpush.bf16.msra.mxu0 0
    %421 = vmatpush.bf16.msra.mxu0 0
    %422 = vmatpush.bf16.msra.mxu0 %v319
    %423 = vmatpush.bf16.msra.mxu0 %v318
    %424 = vmatmul.bf16.gmra.mxu0 %v414
    %v425 = vpop.f32.mrf.mxu0
    %v426 = vadd.f32 0.0, %v425
    %v427 = vpop.f32.mrf.mxu0
    %428 = vdwg.mxu0
    %v429 = vadd.f32 %v169, %v426
    %v430 = vmul.f32 %v429, 0.5
    %v431 = vtanh.pop %v430
    %v432 = vmul.f32 %v431, 0.5
    %v433 = vadd.f32 %v432, 0.5
    %v434 = vtanh.pop %v429
    %v435 = vmul.f32 %v433, %v402
    %437 = vrot.lane.b32.xlu0 %v434, 64
    %v438 = vpop.permute.xlu0 %437
    %v440 = vmul.f32 %v433, %v438
    %442 = vrot.lane.b32.xlu0 %v440, 32
    %v443 = vpop.permute.xlu0 %442
    %v445 = vadd.f32 %v435, %v443
    %v446 = vtanh.pop %v445
    %448 = vrot.lane.b32.xlu0 %v446, 64
    %v449 = vpop.permute.xlu0 %448
    %v451 = vmul.f32 %v433, %v449
    %v452 = vpack.c.bf16 %v451, %v451
    %454 = vrot.lane.b32.xlu0 %v452, 32
    %v455 = vpop.permute.xlu0 %454
    %v457 = vsel %vm322, %v455, 0
    %459 = vmatpush.bf16.msra.mxu0 0
    %460 = vmatpush.bf16.msra.mxu0 0
    %461 = vmatpush.bf16.msra.mxu0 0
    %462 = vmatpush.bf16.msra.mxu0 0
    %463 = vmatpush.bf16.msra.mxu0 0
    %464 = vmatpush.bf16.msra.mxu0 0
    %465 = vmatpush.bf16.msra.mxu0 %v319
    %466 = vmatpush.bf16.msra.mxu0 %v318
    %467 = vmatmul.bf16.gmra.mxu0 %v457
    %v468 = vpop.f32.mrf.mxu0
    %v469 = vadd.f32 0.0, %v468
    %v470 = vpop.f32.mrf.mxu0
    %471 = vdwg.mxu0
    %v472 = vadd.f32 %v196, %v469
    %v473 = vmul.f32 %v472, 0.5
    %v474 = vtanh.pop %v473
    %v475 = vmul.f32 %v474, 0.5
    %v476 = vadd.f32 %v475, 0.5
    %v477 = vtanh.pop %v472
    %v478 = vmul.f32 %v476, %v445
    %480 = vrot.lane.b32.xlu0 %v477, 64
    %v481 = vpop.permute.xlu0 %480
    %v483 = vmul.f32 %v476, %v481
    %485 = vrot.lane.b32.xlu0 %v483, 32
    %v486 = vpop.permute.xlu0 %485
    %v488 = vadd.f32 %v478, %v486
    %v489 = vtanh.pop %v488
    %491 = vrot.lane.b32.xlu0 %v489, 64
    %v492 = vpop.permute.xlu0 %491
    %v494 = vmul.f32 %v476, %v492
    %v495 = vpack.c.bf16 %v494, %v494
    %497 = vrot.lane.b32.xlu0 %v495, 32
    %v498 = vpop.permute.xlu0 %497
    %v500 = vsel %vm322, %v498, 0
    %502 = vmatpush.bf16.msra.mxu0 0
    %503 = vmatpush.bf16.msra.mxu0 0
    %504 = vmatpush.bf16.msra.mxu0 0
    %505 = vmatpush.bf16.msra.mxu0 0
    %506 = vmatpush.bf16.msra.mxu0 0
    %507 = vmatpush.bf16.msra.mxu0 0
    %508 = vmatpush.bf16.msra.mxu0 %v319
    %509 = vmatpush.bf16.msra.mxu0 %v318
    %510 = vmatmul.bf16.gmra.mxu0 %v500
    %v511 = vpop.f32.mrf.mxu0
    %v512 = vadd.f32 0.0, %v511
    %v513 = vpop.f32.mrf.mxu0
    %514 = vdwg.mxu0
    %v515 = vadd.f32 %v223, %v512
    %v516 = vmul.f32 %v515, 0.5
    %v517 = vtanh.pop %v516
    %v518 = vmul.f32 %v517, 0.5
    %v519 = vadd.f32 %v518, 0.5
    %v520 = vtanh.pop %v515
    %v521 = vmul.f32 %v519, %v488
    %523 = vrot.lane.b32.xlu0 %v520, 64
    %v524 = vpop.permute.xlu0 %523
    %v526 = vmul.f32 %v519, %v524
    %528 = vrot.lane.b32.xlu0 %v526, 32
    %v529 = vpop.permute.xlu0 %528
    %v531 = vadd.f32 %v521, %v529
    %v532 = vtanh.pop %v531
    %534 = vrot.lane.b32.xlu0 %v532, 64
    %v535 = vpop.permute.xlu0 %534
    %v537 = vmul.f32 %v519, %v535
    %v538 = vpack.c.bf16 %v537, %v537
    %540 = vrot.lane.b32.xlu0 %v538, 32
    %v541 = vpop.permute.xlu0 %540
    %v543 = vsel %vm322, %v541, 0
    %545 = vmatpush.bf16.msra.mxu0 0
    %546 = vmatpush.bf16.msra.mxu0 0
    %547 = vmatpush.bf16.msra.mxu0 0
    %548 = vmatpush.bf16.msra.mxu0 0
    %549 = vmatpush.bf16.msra.mxu0 0
    %550 = vmatpush.bf16.msra.mxu0 0
    %551 = vmatpush.bf16.msra.mxu0 %v319
    %552 = vmatpush.bf16.msra.mxu0 %v318
    %553 = vmatmul.bf16.gmra.mxu0 %v543
    %v554 = vpop.f32.mrf.mxu0
    %v555 = vadd.f32 0.0, %v554
    %v556 = vpop.f32.mrf.mxu0
    %557 = vdwg.mxu0
    %v558 = vadd.f32 %v250, %v555
    %v559 = vmul.f32 %v558, 0.5
    %v560 = vtanh.pop %v559
    %v561 = vmul.f32 %v560, 0.5
    %v562 = vadd.f32 %v561, 0.5
    %v563 = vtanh.pop %v558
    %v564 = vmul.f32 %v562, %v531
    %566 = vrot.lane.b32.xlu0 %v563, 64
    %v567 = vpop.permute.xlu0 %566
    %v569 = vmul.f32 %v562, %v567
    %571 = vrot.lane.b32.xlu0 %v569, 32
    %v572 = vpop.permute.xlu0 %571
    %v574 = vadd.f32 %v564, %v572
    %v575 = vtanh.pop %v574
    %577 = vrot.lane.b32.xlu0 %v575, 64
    %v578 = vpop.permute.xlu0 %577
    %v580 = vmul.f32 %v562, %v578
    %v581 = vpack.c.bf16 %v580, %v580
    %583 = vrot.lane.b32.xlu0 %v581, 32
    %v584 = vpop.permute.xlu0 %583
    %v586 = vsel %vm322, %v584, 0
    %588 = vmatpush.bf16.msra.mxu0 0
    %589 = vmatpush.bf16.msra.mxu0 0
    %590 = vmatpush.bf16.msra.mxu0 0
    %591 = vmatpush.bf16.msra.mxu0 0
    %592 = vmatpush.bf16.msra.mxu0 0
    %593 = vmatpush.bf16.msra.mxu0 0
    %594 = vmatpush.bf16.msra.mxu0 %v319
    %595 = vmatpush.bf16.msra.mxu0 %v318
    %596 = vmatmul.bf16.gmra.mxu0 %v586
    %v597 = vpop.f32.mrf.mxu0
    %v598 = vadd.f32 0.0, %v597
    %v599 = vpop.f32.mrf.mxu0
    %600 = vdwg.mxu0
    %v601 = vadd.f32 %v277, %v598
    %v602 = vmul.f32 %v601, 0.5
    %v603 = vtanh.pop %v602
    %v604 = vmul.f32 %v603, 0.5
    %v605 = vadd.f32 %v604, 0.5
    %v606 = vtanh.pop %v601
    %v607 = vmul.f32 %v605, %v574
    %609 = vrot.lane.b32.xlu0 %v606, 64
    %v610 = vpop.permute.xlu0 %609
    %v612 = vmul.f32 %v605, %v610
    %614 = vrot.lane.b32.xlu0 %v612, 32
    %v615 = vpop.permute.xlu0 %614
    %v617 = vadd.f32 %v607, %v615
    %v618 = vtanh.pop %v617
    %620 = vrot.lane.b32.xlu0 %v618, 64
    %v621 = vpop.permute.xlu0 %620
    %v623 = vmul.f32 %v605, %v621
    %v624 = vpack.c.bf16 %v623, %v623
    %626 = vrot.lane.b32.xlu0 %v624, 32
    %v627 = vpop.permute.xlu0 %626
    %v629 = vsel %vm322, %v627, 0
    %631 = vmatpush.bf16.msra.mxu0 0
    %632 = vmatpush.bf16.msra.mxu0 0
    %633 = vmatpush.bf16.msra.mxu0 0
    %634 = vmatpush.bf16.msra.mxu0 0
    %635 = vmatpush.bf16.msra.mxu0 0
    %636 = vmatpush.bf16.msra.mxu0 0
    %637 = vmatpush.bf16.msra.mxu0 %v319
    %638 = vmatpush.bf16.msra.mxu0 %v318
    %639 = vmatmul.bf16.gmra.mxu0 %v629
    %v640 = vpop.f32.mrf.mxu0
    %v641 = vadd.f32 0.0, %v640
    %v642 = vpop.f32.mrf.mxu0
    %643 = vdwg.mxu0
    %v644 = vadd.f32 %v304, %v641
    %v645 = vmul.f32 %v644, 0.5
    %v646 = vtanh.pop %v645
    %v647 = vmul.f32 %v646, 0.5
    %v648 = vadd.f32 %v647, 0.5
    %v649 = vtanh.pop %v644
    %v650 = vmul.f32 %v648, %v617
    %652 = vrot.lane.b32.xlu0 %v649, 64
    %v653 = vpop.permute.xlu0 %652
    %v655 = vmul.f32 %v648, %v653
    %657 = vrot.lane.b32.xlu0 %v655, 32
    %v658 = vpop.permute.xlu0 %657
    %v660 = vadd.f32 %v650, %v658
    %v661 = vtanh.pop %v660
    %663 = vrot.lane.b32.xlu0 %v661, 64
    %v664 = vpop.permute.xlu0 %663
    %v666 = vmul.f32 %v648, %v664
    %668 = vrot.lane.b32.xlu0 %v666, 32
    %v669 = vpop.permute.xlu0 %668
    %vm671 = vcmask 254976
    %672 = vst.msk [vmem:[#allocation2] sm:$0x3] %vm671, %v669
    %674 = vrot.lane.b32.xlu0 %v660, 96
    %v675 = vpop.permute.xlu0 %674
    %677 = vst.msk [vmem:[#allocation3] sm:$0x3] %vm671, %v675
    // Predicated region
    $region34: #{tpu_custom_call.1} parent=1 // pred_check
      %p678 = pneg %p66
    $region35: #{tpu_custom_call.1} parent=1 // pred_check_branch
      %680 = sbr.rel (%p678) target = $region37
    $region36: #{tpu_custom_call.1} parent=1 // pred_region
      %681 = vst.msk [vmem:[#allocation10] sm:$0x3] %vm671, %v669
    $region37: #{tpu_custom_call.1} parent=1 // pred_fallthru
      _
    // Predicated region
    $region38: #{tpu_custom_call.1} parent=1 // pred_check
      _
    $region39: #{tpu_custom_call.1} parent=1 // pred_check_branch
      %683 = sbr.rel (0) target = $region41
    $region40: #{tpu_custom_call.1} parent=1 // pred_region
      %685 = vsyncadd [#allocation6], 0
      %s687 = sshll.u32 [#allocation10], 4
      %s688 = int_to_ptr.vmem [resolvable:$true] %s687
      %s689 = sshll.u32 %s4, 4
      %s690 = int_to_ptr.hbm [resolvable:$true] %s689
      %692 = dma.vmem_to_hbm [thread:$0]  %s688, 32, %s690, [#allocation6]
    $region41: #{tpu_custom_call.1} parent=1 // pred_fallthru
      _
    // Predicated region
    $region42: #{tpu_custom_call.1} parent=1 // pred_check
      _
    $region43: #{tpu_custom_call.1} parent=1 // pred_check_branch
      %694 = sbr.rel (0) target = $region45
    $region44: #{tpu_custom_call.1} parent=1 // pred_region
      %696 = dma.done [#allocation6], 32
    $region45: #{tpu_custom_call.1} parent=1 // pred_fallthru
      _
    %697 = vsyncpa [#allocation5], 1
    %698 = vsyncpa [#allocation8], 1
    %699 = vsyncpa [#allocation6], 1

// kernel: tpu_custom_call.1
$region0: #{tpu_custom_call.1}
  #allocation0 [shape = 'u32[]', space=smem, size = 0x4, offset = 0x4, fixed_abs, tag = 'smem constant byte address 0x4 - core index']
  #allocation1 [shape = 'u32[72,128]{1,0:T(1,128)}', space=vmem, size = 0x9000, scoped, tag = 'internal scratch']
  #allocation2 [shape = 'f32[2,32]{1,0:T(2,128)}', space=vmem, size = 0x400, scoped, tag = 'scratch operand']
  #allocation3 [shape = 'f32[2,32]{1,0:T(2,128)}', space=vmem, size = 0x400, scoped, tag = 'scratch operand']
  %s0 = inlined_call_operand.hbm [shape: f32[2,8,16], index: 0, kind: input, shape index: {}]
  %s1 = inlined_call_operand.hbm [shape: bf16[16,128], index: 1, kind: input, shape index: {}]
  %s2 = inlined_call_operand.hbm [shape: bf16[32,128], index: 2, kind: input, shape index: {}]
  %s3 = inlined_call_operand.vmem [shape: f32[1,128], index: 3, kind: input, shape index: {}]
  %s4 = inlined_call_operand.hbm [shape: f32[2,32], index: 4, kind: output, shape index: {}]
  %s5 = sld [smem:[#allocation0]]
  $region46: #{tpu_custom_call.1} parent=0
    _
  %s7 = ssub.s32 1, %s5
  %s8 = scalar_select 0, %s7, %s5
  $region1: #{tpu_custom_call.1} parent=0
    #allocation4 [shape = 'u8[8192]{0}', space=vmem, size = 0x2000, scoped, tag = 'input window, operand 0, single buffered']
    #allocation5 [shape = 's32[1]{0}', space=sflag, size = 0x4, scoped, tag = 'scoped memory for tpu_custom_call.1']
    #allocation6 [shape = 's32[1]{0}', space=sflag, size = 0x4, scoped, tag = 'scoped memory for tpu_custom_call.1']
    #allocation7 [shape = 'u8[4096]{0}', space=vmem, size = 0x1000, scoped, tag = 'input window, operand 1, single buffered']
    #allocation8 [shape = 's32[1]{0}', space=sflag, size = 0x4, scoped, tag = 'scoped memory for tpu_custom_call.1']
    #allocation9 [shape = 'u8[8192]{0}', space=vmem, size = 0x2000, scoped, tag = 'input window, operand 2, single buffered']
    #allocation10 [shape = 'u8[1024]{0}', space=vmem, size = 0x400, scoped, tag = 'output window, operand 0, single buffered']
    %9 = vsyncpa [#allocation5], 0
    %10 = vsyncpa [#allocation8], 0
    %11 = vsyncpa [#allocation6], 0
    // Predicated region
    $region2: #{tpu_custom_call.1} parent=1 // pred_check
      _
    $region3: #{tpu_custom_call.1} parent=1 // pred_check_branch
      %13 = sbr.rel (0) target = $region5
    $region4: #{tpu_custom_call.1} parent=1 // pred_region
      %15 = vsyncadd [#allocation5], 0
      %s16 = sshll.u32 %s0, 4
      %s17 = int_to_ptr.hbm [resolvable:$true] %s16
      %s18 = sshll.u32 [#allocation4], 4
      %s19 = int_to_ptr.vmem [resolvable:$true] %s18
      %24 = dma.hbm_to_vmem [thread:$0]  %s17, 256, %s19, [#allocation5], 128, 128, 8
    $region5: #{tpu_custom_call.1} parent=1 // pred_fallthru
      _
    // Predicated region
    $region6: #{tpu_custom_call.1} parent=1 // pred_check
      _
    $region7: #{tpu_custom_call.1} parent=1 // pred_check_branch
      %26 = sbr.rel (0) target = $region9
    $region8: #{tpu_custom_call.1} parent=1 // pred_region
      %28 = vsyncadd [#allocation8], 0
      %s29 = sshll.u32 %s1, 4
      %s30 = int_to_ptr.hbm [resolvable:$true] %s29
      %s31 = sshll.u32 [#allocation7], 4
      %s32 = int_to_ptr.vmem [resolvable:$true] %s31
      %37 = dma.hbm_to_vmem [thread:$0]  %s30, 128, %s32, [#allocation8], 64, 64, 4
    $region9: #{tpu_custom_call.1} parent=1 // pred_fallthru
      _
    // Predicated region
    $region10: #{tpu_custom_call.1} parent=1 // pred_check
      _
    $region11: #{tpu_custom_call.1} parent=1 // pred_check_branch
      %39 = sbr.rel (0) target = $region13
    $region12: #{tpu_custom_call.1} parent=1 // pred_region
      %41 = vsyncadd [#allocation8], 0
      %s42 = sshll.u32 %s2, 4
      %s43 = int_to_ptr.hbm [resolvable:$true] %s42
      %s44 = sshll.u32 [#allocation9], 4
      %s45 = int_to_ptr.vmem [resolvable:$true] %s44
      %50 = dma.hbm_to_vmem [thread:$0]  %s43, 256, %s45, [#allocation8], 64, 64, 4
    $region13: #{tpu_custom_call.1} parent=1 // pred_fallthru
      _
    // Predicated region
    $region14: #{tpu_custom_call.1} parent=1 // pred_check
      _
    $region15: #{tpu_custom_call.1} parent=1 // pred_check_branch
      %52 = sbr.rel (0) target = $region17
    $region16: #{tpu_custom_call.1} parent=1 // pred_region
      _
    $region17: #{tpu_custom_call.1} parent=1 // pred_fallthru
      _
    // Predicated region
    $region18: #{tpu_custom_call.1} parent=1 // pred_check
      _
    $region19: #{tpu_custom_call.1} parent=1 // pred_check_branch
      %54 = sbr.rel (0) target = $region21
    $region20: #{tpu_custom_call.1} parent=1 // pred_region
      %56 = dma.done [#allocation5], 256
    $region21: #{tpu_custom_call.1} parent=1 // pred_fallthru
      _
    // Predicated region
    $region22: #{tpu_custom_call.1} parent=1 // pred_check
      _
    $region23: #{tpu_custom_call.1} parent=1 // pred_check_branch
      %58 = sbr.rel (0) target = $region25
    $region24: #{tpu_custom_call.1} parent=1 // pred_region
      %60 = dma.done [#allocation8], 128
    $region25: #{tpu_custom_call.1} parent=1 // pred_fallthru
      _
    // Predicated region
    $region26: #{tpu_custom_call.1} parent=1 // pred_check
      _
    $region27: #{tpu_custom_call.1} parent=1 // pred_check_branch
      %62 = sbr.rel (0) target = $region29
    $region28: #{tpu_custom_call.1} parent=1 // pred_region
      %64 = dma.done [#allocation8], 256
    $region29: #{tpu_custom_call.1} parent=1 // pred_fallthru
      _
    %p66 = scmp.eq.s32.totalorder 0, 0
    // Predicated region
    $region30: #{tpu_custom_call.1} parent=1 // pred_check
      %p67 = pneg %p66
    $region31: #{tpu_custom_call.1} parent=1 // pred_check_branch
      %69 = sbr.rel (%p67) target = $region33
    $region32: #{tpu_custom_call.1} parent=1 // pred_region
      %vm70 = vcmask 254976
      %71 = vst.msk [vmem:[#allocation2] sm:$0x3] %vm70, 0.0
      %72 = vst.msk [vmem:[#allocation3] sm:$0x3] %vm70, 0.0
    $region33: #{tpu_custom_call.1} parent=1 // pred_fallthru
      _
    %v73 = vld [vmem:[#allocation7] sm:$0xf]
    %v74 = vld [vmem:[#allocation7 + $0x4] sm:$0xf]
    %v75 = vld [vmem:[#allocation9] sm:$0xf]
    %v76 = vld [vmem:[#allocation9 + $0x4] sm:$0xf]
    %v77 = vld [vmem:[#allocation9 + $0x8] sm:$0xf]
    %v78 = vld [vmem:[#allocation9 + $0xc] sm:$0xf]
    %v79 = vld [vmem:[%s3] sm:$0x1]
    %v80 = vld [vmem:[#allocation4] sm:$0x1]
    %v81 = vld [vmem:[#allocation4 + $0x8] sm:$0x1]
    %v82 = vpack.c.bf16 %v80, %v80
    %v83 = vpack.c.bf16 %v81, %v81
    %v85 = vperm.slane %v79, 0
    %v89 = vunpack.c.l.b16 %v82
    %v90 = vunpack.c.l.b16 %v83
    %v91 = vrot.slane %v90, 7
    %vm92 = vcmask 1041409
    %v93 = vsel %vm92, %v91, %v89
    %v94 = vpack.c.b16 %v93, %v93
    %v97 = vunpack.c.l.b16 %v73
    %v98 = vunpack.c.l.b16 %v74
    %v99 = vpack.c.b16 %v98, %v97
    %vm101 = vcmask 130048
    %v103 = vsel %vm101, %v94, 0
    %105 = vmatpush.bf16.msra.mxu0 0
    %106 = vmatpush.bf16.msra.mxu0 0
    %107 = vmatpush.bf16.msra.mxu0 0
    %108 = vmatpush.bf16.msra.mxu0 0
    %109 = vmatpush.bf16.msra.mxu0 0
    %110 = vmatpush.bf16.msra.mxu0 0
    %111 = vmatpush.bf16.msra.mxu0 0
    %112 = vmatpush.bf16.msra.mxu0 %v99
    %113 = vmatmul.bf16.gmra.mxu0 %v103
    %v114 = vpop.f32.mrf.mxu0
    %v115 = vadd.f32 %v85, %v114
    %v116 = vpop.f32.mrf.mxu0
    %117 = vdwg.mxu0
    %v118 = vld [vmem:[#allocation4 + $0x1] sm:$0x1]
    %v119 = vld [vmem:[#allocation4 + $0x9] sm:$0x1]
    %v120 = vpack.c.bf16 %v118, %v118
    %v121 = vpack.c.bf16 %v119, %v119
    %v124 = vunpack.c.l.b16 %v120
    %v125 = vunpack.c.l.b16 %v121
    %v126 = vrot.slane %v125, 7
    %v127 = vsel %vm92, %v126, %v124
    %v128 = vpack.c.b16 %v127, %v127
    %v130 = vsel %vm101, %v128, 0
    %132 = vmatpush.bf16.msra.mxu0 0
    %133 = vmatpush.bf16.msra.mxu0 0
    %134 = vmatpush.bf16.msra.mxu0 0
    %135 = vmatpush.bf16.msra.mxu0 0
    %136 = vmatpush.bf16.msra.mxu0 0
    %137 = vmatpush.bf16.msra.mxu0 0
    %138 = vmatpush.bf16.msra.mxu0 0
    %139 = vmatpush.bf16.msra.mxu0 %v99
    %140 = vmatmul.bf16.gmra.mxu0 %v130
    %v141 = vpop.f32.mrf.mxu0
    %v142 = vadd.f32 %v85, %v141
    %v143 = vpop.f32.mrf.mxu0
    %144 = vdwg.mxu0
    %v145 = vld [vmem:[#allocation4 + $0x2] sm:$0x1]
    %v146 = vld [vmem:[#allocation4 + $0xa] sm:$0x1]
    %v147 = vpack.c.bf16 %v145, %v145
    %v148 = vpack.c.bf16 %v146, %v146
    %v151 = vunpack.c.l.b16 %v147
    %v152 = vunpack.c.l.b16 %v148
    %v153 = vrot.slane %v152, 7
    %v154 = vsel %vm92, %v153, %v151
    %v155 = vpack.c.b16 %v154, %v154
    %v157 = vsel %vm101, %v155, 0
    %159 = vmatpush.bf16.msra.mxu0 0
    %160 = vmatpush.bf16.msra.mxu0 0
    %161 = vmatpush.bf16.msra.mxu0 0
    %162 = vmatpush.bf16.msra.mxu0 0
    %163 = vmatpush.bf16.msra.mxu0 0
    %164 = vmatpush.bf16.msra.mxu0 0
    %165 = vmatpush.bf16.msra.mxu0 0
    %166 = vmatpush.bf16.msra.mxu0 %v99
    %167 = vmatmul.bf16.gmra.mxu0 %v157
    %v168 = vpop.f32.mrf.mxu0
    %v169 = vadd.f32 %v85, %v168
    %v170 = vpop.f32.mrf.mxu0
    %171 = vdwg.mxu0
    %v172 = vld [vmem:[#allocation4 + $0x3] sm:$0x1]
    %v173 = vld [vmem:[#allocation4 + $0xb] sm:$0x1]
    %v174 = vpack.c.bf16 %v172, %v172
    %v175 = vpack.c.bf16 %v173, %v173
    %v178 = vunpack.c.l.b16 %v174
    %v179 = vunpack.c.l.b16 %v175
    %v180 = vrot.slane %v179, 7
    %v181 = vsel %vm92, %v180, %v178
    %v182 = vpack.c.b16 %v181, %v181
    %v184 = vsel %vm101, %v182, 0
    %186 = vmatpush.bf16.msra.mxu0 0
    %187 = vmatpush.bf16.msra.mxu0 0
    %188 = vmatpush.bf16.msra.mxu0 0
    %189 = vmatpush.bf16.msra.mxu0 0
    %190 = vmatpush.bf16.msra.mxu0 0
    %191 = vmatpush.bf16.msra.mxu0 0
    %192 = vmatpush.bf16.msra.mxu0 0
    %193 = vmatpush.bf16.msra.mxu0 %v99
    %194 = vmatmul.bf16.gmra.mxu0 %v184
    %v195 = vpop.f32.mrf.mxu0
    %v196 = vadd.f32 %v85, %v195
    %v197 = vpop.f32.mrf.mxu0
    %198 = vdwg.mxu0
    %v199 = vld [vmem:[#allocation4 + $0x4] sm:$0x1]
    %v200 = vld [vmem:[#allocation4 + $0xc] sm:$0x1]
    %v201 = vpack.c.bf16 %v199, %v199
    %v202 = vpack.c.bf16 %v200, %v200
    %v205 = vunpack.c.l.b16 %v201
    %v206 = vunpack.c.l.b16 %v202
    %v207 = vrot.slane %v206, 7
    %v208 = vsel %vm92, %v207, %v205
    %v209 = vpack.c.b16 %v208, %v208
    %v211 = vsel %vm101, %v209, 0
    %213 = vmatpush.bf16.msra.mxu0 0
    %214 = vmatpush.bf16.msra.mxu0 0
    %215 = vmatpush.bf16.msra.mxu0 0
    %216 = vmatpush.bf16.msra.mxu0 0
    %217 = vmatpush.bf16.msra.mxu0 0
    %218 = vmatpush.bf16.msra.mxu0 0
    %219 = vmatpush.bf16.msra.mxu0 0
    %220 = vmatpush.bf16.msra.mxu0 %v99
    %221 = vmatmul.bf16.gmra.mxu0 %v211
    %v222 = vpop.f32.mrf.mxu0
    %v223 = vadd.f32 %v85, %v222
    %v224 = vpop.f32.mrf.mxu0
    %225 = vdwg.mxu0
    %v226 = vld [vmem:[#allocation4 + $0x5] sm:$0x1]
    %v227 = vld [vmem:[#allocation4 + $0xd] sm:$0x1]
    %v228 = vpack.c.bf16 %v226, %v226
    %v229 = vpack.c.bf16 %v227, %v227
    %v232 = vunpack.c.l.b16 %v228
    %v233 = vunpack.c.l.b16 %v229
    %v234 = vrot.slane %v233, 7
    %v235 = vsel %vm92, %v234, %v232
    %v236 = vpack.c.b16 %v235, %v235
    %v238 = vsel %vm101, %v236, 0
    %240 = vmatpush.bf16.msra.mxu0 0
    %241 = vmatpush.bf16.msra.mxu0 0
    %242 = vmatpush.bf16.msra.mxu0 0
    %243 = vmatpush.bf16.msra.mxu0 0
    %244 = vmatpush.bf16.msra.mxu0 0
    %245 = vmatpush.bf16.msra.mxu0 0
    %246 = vmatpush.bf16.msra.mxu0 0
    %247 = vmatpush.bf16.msra.mxu0 %v99
    %248 = vmatmul.bf16.gmra.mxu0 %v238
    %v249 = vpop.f32.mrf.mxu0
    %v250 = vadd.f32 %v85, %v249
    %v251 = vpop.f32.mrf.mxu0
    %252 = vdwg.mxu0
    %v253 = vld [vmem:[#allocation4 + $0x6] sm:$0x1]
    %v254 = vld [vmem:[#allocation4 + $0xe] sm:$0x1]
    %v255 = vpack.c.bf16 %v253, %v253
    %v256 = vpack.c.bf16 %v254, %v254
    %v259 = vunpack.c.l.b16 %v255
    %v260 = vunpack.c.l.b16 %v256
    %v261 = vrot.slane %v260, 7
    %v262 = vsel %vm92, %v261, %v259
    %v263 = vpack.c.b16 %v262, %v262
    %v265 = vsel %vm101, %v263, 0
    %267 = vmatpush.bf16.msra.mxu0 0
    %268 = vmatpush.bf16.msra.mxu0 0
    %269 = vmatpush.bf16.msra.mxu0 0
    %270 = vmatpush.bf16.msra.mxu0 0
    %271 = vmatpush.bf16.msra.mxu0 0
    %272 = vmatpush.bf16.msra.mxu0 0
    %273 = vmatpush.bf16.msra.mxu0 0
    %274 = vmatpush.bf16.msra.mxu0 %v99
    %275 = vmatmul.bf16.gmra.mxu0 %v265
    %v276 = vpop.f32.mrf.mxu0
    %v277 = vadd.f32 %v85, %v276
    %v278 = vpop.f32.mrf.mxu0
    %279 = vdwg.mxu0
    %v280 = vld [vmem:[#allocation4 + $0x7] sm:$0x1]
    %v281 = vld [vmem:[#allocation4 + $0xf] sm:$0x1]
    %v282 = vpack.c.bf16 %v280, %v280
    %v283 = vpack.c.bf16 %v281, %v281
    %v286 = vunpack.c.l.b16 %v282
    %v287 = vunpack.c.l.b16 %v283
    %v288 = vrot.slane %v287, 7
    %v289 = vsel %vm92, %v288, %v286
    %v290 = vpack.c.b16 %v289, %v289
    %v292 = vsel %vm101, %v290, 0
    %294 = vmatpush.bf16.msra.mxu0 0
    %295 = vmatpush.bf16.msra.mxu0 0
    %296 = vmatpush.bf16.msra.mxu0 0
    %297 = vmatpush.bf16.msra.mxu0 0
    %298 = vmatpush.bf16.msra.mxu0 0
    %299 = vmatpush.bf16.msra.mxu0 0
    %300 = vmatpush.bf16.msra.mxu0 0
    %301 = vmatpush.bf16.msra.mxu0 %v99
    %302 = vmatmul.bf16.gmra.mxu0 %v292
    %v303 = vpop.f32.mrf.mxu0
    %v304 = vadd.f32 %v85, %v303
    %v305 = vpop.f32.mrf.mxu0
    %306 = vdwg.mxu0
    %v307 = vld [vmem:[#allocation2] sm:$0x3]
    %v308 = vld [vmem:[#allocation3] sm:$0x3]
    %v309 = vpack.c.bf16 %v307, %v307
    %v314 = vunpack.c.l.b16 %v75
    %v315 = vunpack.c.l.b16 %v76
    %v316 = vunpack.c.l.b16 %v77
    %v317 = vunpack.c.l.b16 %v78
    %v318 = vpack.c.b16 %v315, %v314
    %v319 = vpack.c.b16 %v317, %v316
    %vm322 = vcmask 261120
    %v324 = vsel %vm322, %v309, 0
    %326 = vmatpush.bf16.msra.mxu0 0
    %327 = vmatpush.bf16.msra.mxu0 0
    %328 = vmatpush.bf16.msra.mxu0 0
    %329 = vmatpush.bf16.msra.mxu0 0
    %330 = vmatpush.bf16.msra.mxu0 0
    %331 = vmatpush.bf16.msra.mxu0 0
    %332 = vmatpush.bf16.msra.mxu0 %v319
    %333 = vmatpush.bf16.msra.mxu0 %v318
    %334 = vmatmul.bf16.gmra.mxu0 %v324
    %v335 = vpop.f32.mrf.mxu0
    %v336 = vadd.f32 0.0, %v335
    %v337 = vpop.f32.mrf.mxu0
    %338 = vdwg.mxu0
    %v339 = vadd.f32 %v115, %v336
    %v340 = vmul.f32 %v339, 0.5
    %v341 = vtanh.pop %v340
    %v342 = vmul.f32 %v341, 0.5
    %v343 = vadd.f32 %v342, 0.5
    %v344 = vtanh.pop %v339
    %346 = vrot.lane.b32.xlu0 %v308, 32
    %v347 = vpop.permute.xlu0 %346
    %v349 = vmul.f32 %v343, %v347
    %351 = vrot.lane.b32.xlu0 %v344, 64
    %v352 = vpop.permute.xlu0 %351
    %v354 = vmul.f32 %v343, %v352
    %356 = vrot.lane.b32.xlu0 %v354, 32
    %v357 = vpop.permute.xlu0 %356
    %v359 = vadd.f32 %v349, %v357
    %v360 = vtanh.pop %v359
    %362 = vrot.lane.b32.xlu0 %v360, 64
    %v363 = vpop.permute.xlu0 %362
    %v365 = vmul.f32 %v343, %v363
    %v366 = vpack.c.bf16 %v365, %v365
    %368 = vrot.lane.b32.xlu0 %v366, 32
    %v369 = vpop.permute.xlu0 %368
    %v371 = vsel %vm322, %v369, 0
    %373 = vmatpush.bf16.msra.mxu0 0
    %374 = vmatpush.bf16.msra.mxu0 0
    %375 = vmatpush.bf16.msra.mxu0 0
    %376 = vmatpush.bf16.msra.mxu0 0
    %377 = vmatpush.bf16.msra.mxu0 0
    %378 = vmatpush.bf16.msra.mxu0 0
    %379 = vmatpush.bf16.msra.mxu0 %v319
    %380 = vmatpush.bf16.msra.mxu0 %v318
    %381 = vmatmul.bf16.gmra.mxu0 %v371
    %v382 = vpop.f32.mrf.mxu0
    %v383 = vadd.f32 0.0, %v382
    %v384 = vpop.f32.mrf.mxu0
    %385 = vdwg.mxu0
    %v386 = vadd.f32 %v142, %v383
    %v387 = vmul.f32 %v386, 0.5
    %v388 = vtanh.pop %v387
    %v389 = vmul.f32 %v388, 0.5
    %v390 = vadd.f32 %v389, 0.5
    %v391 = vtanh.pop %v386
    %v392 = vmul.f32 %v390, %v359
    %394 = vrot.lane.b32.xlu0 %v391, 64
    %v395 = vpop.permute.xlu0 %394
    %v397 = vmul.f32 %v390, %v395
    %399 = vrot.lane.b32.xlu0 %v397, 32
    %v400 = vpop.permute.xlu0 %399
    %v402 = vadd.f32 %v392, %v400
    %v403 = vtanh.pop %v402
    %405 = vrot.lane.b32.xlu0 %v403, 64
    %v406 = vpop.permute.xlu0 %405
    %v408 = vmul.f32 %v390, %v406
    %v409 = vpack.c.bf16 %v408, %v408
    %411 = vrot.lane.b32.xlu0 %v409, 32
    %v412 = vpop.permute.xlu0 %411
    %v414 = vsel %vm322, %v412, 0
    %416 = vmatpush.bf16.msra.mxu0 0
    %417 = vmatpush.bf16.msra.mxu0 0
    %418 = vmatpush.bf16.msra.mxu0 0
    %419 = vmatpush.bf16.msra.mxu0 0
    %420 = vmatpush.bf16.msra.mxu0 0
    %421 = vmatpush.bf16.msra.mxu0 0
    %422 = vmatpush.bf16.msra.mxu0 %v319
    %423 = vmatpush.bf16.msra.mxu0 %v318
    %424 = vmatmul.bf16.gmra.mxu0 %v414
    %v425 = vpop.f32.mrf.mxu0
    %v426 = vadd.f32 0.0, %v425
    %v427 = vpop.f32.mrf.mxu0
    %428 = vdwg.mxu0
    %v429 = vadd.f32 %v169, %v426
    %v430 = vmul.f32 %v429, 0.5
    %v431 = vtanh.pop %v430
    %v432 = vmul.f32 %v431, 0.5
    %v433 = vadd.f32 %v432, 0.5
    %v434 = vtanh.pop %v429
    %v435 = vmul.f32 %v433, %v402
    %437 = vrot.lane.b32.xlu0 %v434, 64
    %v438 = vpop.permute.xlu0 %437
    %v440 = vmul.f32 %v433, %v438
    %442 = vrot.lane.b32.xlu0 %v440, 32
    %v443 = vpop.permute.xlu0 %442
    %v445 = vadd.f32 %v435, %v443
    %v446 = vtanh.pop %v445
    %448 = vrot.lane.b32.xlu0 %v446, 64
    %v449 = vpop.permute.xlu0 %448
    %v451 = vmul.f32 %v433, %v449
    %v452 = vpack.c.bf16 %v451, %v451
    %454 = vrot.lane.b32.xlu0 %v452, 32
    %v455 = vpop.permute.xlu0 %454
    %v457 = vsel %vm322, %v455, 0
    %459 = vmatpush.bf16.msra.mxu0 0
    %460 = vmatpush.bf16.msra.mxu0 0
    %461 = vmatpush.bf16.msra.mxu0 0
    %462 = vmatpush.bf16.msra.mxu0 0
    %463 = vmatpush.bf16.msra.mxu0 0
    %464 = vmatpush.bf16.msra.mxu0 0
    %465 = vmatpush.bf16.msra.mxu0 %v319
    %466 = vmatpush.bf16.msra.mxu0 %v318
    %467 = vmatmul.bf16.gmra.mxu0 %v457
    %v468 = vpop.f32.mrf.mxu0
    %v469 = vadd.f32 0.0, %v468
    %v470 = vpop.f32.mrf.mxu0
    %471 = vdwg.mxu0
    %v472 = vadd.f32 %v196, %v469
    %v473 = vmul.f32 %v472, 0.5
    %v474 = vtanh.pop %v473
    %v475 = vmul.f32 %v474, 0.5
    %v476 = vadd.f32 %v475, 0.5
    %v477 = vtanh.pop %v472
    %v478 = vmul.f32 %v476, %v445
    %480 = vrot.lane.b32.xlu0 %v477, 64
    %v481 = vpop.permute.xlu0 %480
    %v483 = vmul.f32 %v476, %v481
    %485 = vrot.lane.b32.xlu0 %v483, 32
    %v486 = vpop.permute.xlu0 %485
    %v488 = vadd.f32 %v478, %v486
    %v489 = vtanh.pop %v488
    %491 = vrot.lane.b32.xlu0 %v489, 64
    %v492 = vpop.permute.xlu0 %491
    %v494 = vmul.f32 %v476, %v492
    %v495 = vpack.c.bf16 %v494, %v494
    %497 = vrot.lane.b32.xlu0 %v495, 32
    %v498 = vpop.permute.xlu0 %497
    %v500 = vsel %vm322, %v498, 0
    %502 = vmatpush.bf16.msra.mxu0 0
    %503 = vmatpush.bf16.msra.mxu0 0
    %504 = vmatpush.bf16.msra.mxu0 0
    %505 = vmatpush.bf16.msra.mxu0 0
    %506 = vmatpush.bf16.msra.mxu0 0
    %507 = vmatpush.bf16.msra.mxu0 0
    %508 = vmatpush.bf16.msra.mxu0 %v319
    %509 = vmatpush.bf16.msra.mxu0 %v318
    %510 = vmatmul.bf16.gmra.mxu0 %v500
    %v511 = vpop.f32.mrf.mxu0
    %v512 = vadd.f32 0.0, %v511
    %v513 = vpop.f32.mrf.mxu0
    %514 = vdwg.mxu0
    %v515 = vadd.f32 %v223, %v512
    %v516 = vmul.f32 %v515, 0.5
    %v517 = vtanh.pop %v516
    %v518 = vmul.f32 %v517, 0.5
    %v519 = vadd.f32 %v518, 0.5
    %v520 = vtanh.pop %v515
    %v521 = vmul.f32 %v519, %v488
    %523 = vrot.lane.b32.xlu0 %v520, 64
    %v524 = vpop.permute.xlu0 %523
    %v526 = vmul.f32 %v519, %v524
    %528 = vrot.lane.b32.xlu0 %v526, 32
    %v529 = vpop.permute.xlu0 %528
    %v531 = vadd.f32 %v521, %v529
    %v532 = vtanh.pop %v531
    %534 = vrot.lane.b32.xlu0 %v532, 64
    %v535 = vpop.permute.xlu0 %534
    %v537 = vmul.f32 %v519, %v535
    %v538 = vpack.c.bf16 %v537, %v537
    %540 = vrot.lane.b32.xlu0 %v538, 32
    %v541 = vpop.permute.xlu0 %540
    %v543 = vsel %vm322, %v541, 0
    %545 = vmatpush.bf16.msra.mxu0 0
    %546 = vmatpush.bf16.msra.mxu0 0
    %547 = vmatpush.bf16.msra.mxu0 0
    %548 = vmatpush.bf16.msra.mxu0 0
    %549 = vmatpush.bf16.msra.mxu0 0
    %550 = vmatpush.bf16.msra.mxu0 0
    %551 = vmatpush.bf16.msra.mxu0 %v319
    %552 = vmatpush.bf16.msra.mxu0 %v318
    %553 = vmatmul.bf16.gmra.mxu0 %v543
    %v554 = vpop.f32.mrf.mxu0
    %v555 = vadd.f32 0.0, %v554
    %v556 = vpop.f32.mrf.mxu0
    %557 = vdwg.mxu0
    %v558 = vadd.f32 %v250, %v555
    %v559 = vmul.f32 %v558, 0.5
    %v560 = vtanh.pop %v559
    %v561 = vmul.f32 %v560, 0.5
    %v562 = vadd.f32 %v561, 0.5
    %v563 = vtanh.pop %v558
    %v564 = vmul.f32 %v562, %v531
    %566 = vrot.lane.b32.xlu0 %v563, 64
    %v567 = vpop.permute.xlu0 %566
    %v569 = vmul.f32 %v562, %v567
    %571 = vrot.lane.b32.xlu0 %v569, 32
    %v572 = vpop.permute.xlu0 %571
    %v574 = vadd.f32 %v564, %v572
    %v575 = vtanh.pop %v574
    %577 = vrot.lane.b32.xlu0 %v575, 64
    %v578 = vpop.permute.xlu0 %577
    %v580 = vmul.f32 %v562, %v578
    %v581 = vpack.c.bf16 %v580, %v580
    %583 = vrot.lane.b32.xlu0 %v581, 32
    %v584 = vpop.permute.xlu0 %583
    %v586 = vsel %vm322, %v584, 0
    %588 = vmatpush.bf16.msra.mxu0 0
    %589 = vmatpush.bf16.msra.mxu0 0
    %590 = vmatpush.bf16.msra.mxu0 0
    %591 = vmatpush.bf16.msra.mxu0 0
    %592 = vmatpush.bf16.msra.mxu0 0
    %593 = vmatpush.bf16.msra.mxu0 0
    %594 = vmatpush.bf16.msra.mxu0 %v319
    %595 = vmatpush.bf16.msra.mxu0 %v318
    %596 = vmatmul.bf16.gmra.mxu0 %v586
    %v597 = vpop.f32.mrf.mxu0
    %v598 = vadd.f32 0.0, %v597
    %v599 = vpop.f32.mrf.mxu0
    %600 = vdwg.mxu0
    %v601 = vadd.f32 %v277, %v598
    %v602 = vmul.f32 %v601, 0.5
    %v603 = vtanh.pop %v602
    %v604 = vmul.f32 %v603, 0.5
    %v605 = vadd.f32 %v604, 0.5
    %v606 = vtanh.pop %v601
    %v607 = vmul.f32 %v605, %v574
    %609 = vrot.lane.b32.xlu0 %v606, 64
    %v610 = vpop.permute.xlu0 %609
    %v612 = vmul.f32 %v605, %v610
    %614 = vrot.lane.b32.xlu0 %v612, 32
    %v615 = vpop.permute.xlu0 %614
    %v617 = vadd.f32 %v607, %v615
    %v618 = vtanh.pop %v617
    %620 = vrot.lane.b32.xlu0 %v618, 64
    %v621 = vpop.permute.xlu0 %620
    %v623 = vmul.f32 %v605, %v621
    %v624 = vpack.c.bf16 %v623, %v623
    %626 = vrot.lane.b32.xlu0 %v624, 32
    %v627 = vpop.permute.xlu0 %626
    %v629 = vsel %vm322, %v627, 0
    %631 = vmatpush.bf16.msra.mxu0 0
    %632 = vmatpush.bf16.msra.mxu0 0
    %633 = vmatpush.bf16.msra.mxu0 0
    %634 = vmatpush.bf16.msra.mxu0 0
    %635 = vmatpush.bf16.msra.mxu0 0
    %636 = vmatpush.bf16.msra.mxu0 0
    %637 = vmatpush.bf16.msra.mxu0 %v319
    %638 = vmatpush.bf16.msra.mxu0 %v318
    %639 = vmatmul.bf16.gmra.mxu0 %v629
    %v640 = vpop.f32.mrf.mxu0
    %v641 = vadd.f32 0.0, %v640
    %v642 = vpop.f32.mrf.mxu0
    %643 = vdwg.mxu0
    %v644 = vadd.f32 %v304, %v641
    %v645 = vmul.f32 %v644, 0.5
    %v646 = vtanh.pop %v645
    %v647 = vmul.f32 %v646, 0.5
    %v648 = vadd.f32 %v647, 0.5
    %v649 = vtanh.pop %v644
    %v650 = vmul.f32 %v648, %v617
    %652 = vrot.lane.b32.xlu0 %v649, 64
    %v653 = vpop.permute.xlu0 %652
    %v655 = vmul.f32 %v648, %v653
    %657 = vrot.lane.b32.xlu0 %v655, 32
    %v658 = vpop.permute.xlu0 %657
    %v660 = vadd.f32 %v650, %v658
    %v661 = vtanh.pop %v660
    %663 = vrot.lane.b32.xlu0 %v661, 64
    %v664 = vpop.permute.xlu0 %663
    %v666 = vmul.f32 %v648, %v664
    %668 = vrot.lane.b32.xlu0 %v666, 32
    %v669 = vpop.permute.xlu0 %668
    %vm671 = vcmask 254976
    %672 = vst.msk [vmem:[#allocation2] sm:$0x3] %vm671, %v669
    %674 = vrot.lane.b32.xlu0 %v660, 96
    %v675 = vpop.permute.xlu0 %674
    %677 = vst.msk [vmem:[#allocation3] sm:$0x3] %vm671, %v675
    // Predicated region
    $region34: #{tpu_custom_call.1} parent=1 // pred_check
      %p678 = pneg %p66
    $region35: #{tpu_custom_call.1} parent=1 // pred_check_branch
      %680 = sbr.rel (%p678) target = $region37
    $region36: #{tpu_custom_call.1} parent=1 // pred_region
      %681 = vst.msk [vmem:[#allocation10] sm:$0x3] %vm671, %v669
    $region37: #{tpu_custom_call.1} parent=1 // pred_fallthru
      _
    // Predicated region
    $region38: #{tpu_custom_call.1} parent=1 // pred_check
      _
    $region39: #{tpu_custom_call.1} parent=1 // pred_check_branch
      %683 = sbr.rel (0) target = $region41
    $region40: #{tpu_custom_call.1} parent=1 // pred_region
      %685 = vsyncadd [#allocation6], 0
      %s687 = sshll.u32 [#allocation10], 4
      %s688 = int_to_ptr.vmem [resolvable:$true] %s687
      %s689 = sshll.u32 %s4, 4
      %s690 = int_to_ptr.hbm [resolvable:$true] %s689
      %692 = dma.vmem_to_hbm [thread:$0]  %s688, 32, %s690, [#allocation6]
    $region41: #{tpu_custom_call.1} parent=1 // pred_fallthru
      _
    // Predicated region
    $region42: #{tpu_custom_call.1} parent=1 // pred_check
      _
    $region43: #{tpu_custom_call.1} parent=1 // pred_check_branch
      %694 = sbr.rel (0) target = $region45
    $region44: #{tpu_custom_call.1} parent=1 // pred_region
      %696 = dma.done [#allocation6], 32
    $region45: #{tpu_custom_call.1} parent=1 // pred_fallthru
      _
    %697 = vsyncpa [#allocation5], 1
    %698 = vsyncpa [#allocation8], 1
    %699 = vsyncpa [#allocation6], 1

</llo_original>
